<compile_context>
chip_gen: v7x
topology: tpu7x:2x2x1
jax: 0.10.0
libtpu: 0.0.40
codegen_flags: <defaults>
</compile_context>

<pallas_src>
import functools

import jax
import jax.numpy as jnp
from jax.experimental import pallas as pl
from jax.experimental.pallas import tpu as pltpu

ROWS = 8    # batch rows per grid block (one sublane tile / MXU row group)
N_BUF = 4   # gather buffer slots -> prefetch depth of N_BUF - 1 sequence steps


def _round_up(x, m):
    return (x + m - 1) // m * m


def _bert_kernel(ids_ref, emb_hbm, wt_ref, b_ref, out_ref,
                 acc_ref, buf_ref, sem_ref, *, seq_len, inv_seq_len):
    # ids_ref : [B_pad, S] int32 SMEM (scalar prefetch) -- token ids
    # emb_hbm : [V, H_pad]       HBM (pl.ANY)           -- embedding table
    # wt_ref  : [H_pad, C_pad]   VMEM f32               -- fc weight (pre-transposed)
    # b_ref   : [1, C_pad]       VMEM f32               -- fc bias
    # out_ref : [ROWS, C_pad]    VMEM f32               -- logits block
    # acc_ref : [ROWS, H_pad]    VMEM f32 scratch       -- running sum over sequence
    # buf_ref : [N_BUF, ROWS, H_pad] VMEM scratch       -- gather landing buffers
    # sem_ref : [N_BUF, ROWS]    DMA semaphores (one per in-flight row copy)
    blk = pl.program_id(0)
    row0 = blk * ROWS
    depth = min(N_BUF - 1, seq_len)

    def issue(s, slot):
        # Gather the ROWS embedding rows for sequence position s into buf[slot].
        for r in range(ROWS):
            tok = ids_ref[row0 + r, s]
            pltpu.make_async_copy(
                emb_hbm.at[pl.ds(tok, 1)],
                buf_ref.at[slot, pl.ds(r, 1)],
                sem_ref.at[slot, r],
            ).start()

    def wait_slot(slot):
        for r in range(ROWS):
            pltpu.make_async_copy(
                emb_hbm.at[pl.ds(0, 1)],             # same shape as the started copy
                buf_ref.at[slot, pl.ds(r, 1)],
                sem_ref.at[slot, r],
            ).wait()

    acc_ref[...] = jnp.zeros_like(acc_ref)

    # Prime the pipeline: keep (N_BUF - 1) sequence steps of row DMAs in flight.
    for p in range(depth):
        issue(p, p % N_BUF)

    @pl.loop(0, seq_len)
    def _(s):
        slot = s % N_BUF
        wait_slot(slot)

        @pl.when(s + depth < seq_len)
        def _():
            issue(s + depth, (s + depth) % N_BUF)

        # f32 accumulation of the gathered rows (exact, whatever the table dtype).
        acc_ref[...] += buf_ref[slot].astype(jnp.float32)

    pooled = acc_ref[...] * inv_seq_len                     # [ROWS, H_pad] mean
    logits = jnp.dot(pooled, wt_ref[...],
                     preferred_element_type=jnp.float32)    # [ROWS, C_pad] on MXU
    out_ref[...] = logits + b_ref[...]


def bert_forward(input_ids, emb_table, fc_weight, fc_bias):
    """input_ids: [B, S] int; emb_table: [V, H]; fc_weight: [C, H]; fc_bias: [C]."""
    B, S = input_ids.shape
    V, H = emb_table.shape
    C = fc_weight.shape[0]

    B_pad = _round_up(max(B, ROWS), ROWS)       # 8-row batch blocks
    H_pad = _round_up(H, 128)                   # lane-aligned hidden dim
    C_pad = _round_up(max(C, 128), 128)         # lane-dense output (unmasked stores)
    n_blocks = B_pad // ROWS                    # >= 2 needed to engage both v7x TCs

    # Clamp out-of-range ids (PyTorch nn.Embedding would raise); pad batch with 0s.
    ids = jnp.clip(input_ids.astype(jnp.int32), 0, V - 1)
    ids = jnp.pad(ids, ((0, B_pad - B), (0, 0)))

    # Embedding table stays in its native dtype; pad H only if not lane-aligned.
    emb = emb_table
    if H_pad != H:
        emb = jnp.pad(emb, ((0, 0), (0, H_pad - H)))

    # fc weight pre-transposed to [H, C], zero-padded; kept f32 (C is tiny, so an
    # f32 matmul is cheap and matches the PyTorch reference more closely).
    wt = jnp.pad(fc_weight.astype(jnp.float32).T, ((0, H_pad - H), (0, C_pad - C)))
    bias2d = jnp.pad(fc_bias.astype(jnp.float32), (0, C_pad - C)).reshape(1, C_pad)

    grid_spec = pltpu.PrefetchScalarGridSpec(
        num_scalar_prefetch=1,                  # ids -> SMEM, drive the DMA gather
        grid=(n_blocks,),                       # batch blocks only; seq loop in-kernel
        in_specs=[
            pl.BlockSpec(memory_space=pl.ANY),                    # emb table in HBM
            pl.BlockSpec((H_pad, C_pad), lambda b, ids: (0, 0)),  # fc weight (whole)
            pl.BlockSpec((1, C_pad), lambda b, ids: (0, 0)),      # fc bias
        ],
        out_specs=pl.BlockSpec((ROWS, C_pad), lambda b, ids: (b, 0)),
        scratch_shapes=[
            pltpu.VMEM((ROWS, H_pad), jnp.float32),          # sequence-sum accumulator
            pltpu.VMEM((N_BUF, ROWS, H_pad), emb.dtype),     # gather buffers
            pltpu.SemaphoreType.DMA((N_BUF, ROWS)),          # one sem per row copy
        ],
    )

    out = pl.pallas_call(
        functools.partial(_bert_kernel, seq_len=S, inv_seq_len=1.0 / S),
        grid_spec=grid_spec,
        out_shape=jax.ShapeDtypeStruct((B_pad, C_pad), jnp.float32),
        compiler_params=pltpu.CompilerParams(
            dimension_semantics=("parallel",),
        ),
    )(ids, emb, wt, bias2d)

    return out[:B, :C]


def reference_forward(input_ids, emb_table, fc_weight, fc_bias):
    embedded = emb_table[input_ids]              # [B, S, H]
    pooled = jnp.mean(embedded, axis=1)          # [B, H]
    return pooled @ fc_weight.T + fc_bias        # [B, C]


if __name__ == "__main__":
    # Small deterministic config matching the module (Embedding -> mean -> Linear).
    vocab_size = 64
    hidden_size = 256
    num_classes = 2
    batch = 4
    seq_len = 8

    key = jax.random.PRNGKey(0)
    k_emb, k_w, k_b, k_ids = jax.random.split(key, 4)

    emb_table = jax.random.normal(k_emb, (vocab_size, hidden_size), jnp.float32)
    fc_weight = jax.random.normal(k_w, (num_classes, hidden_size), jnp.float32) * 0.1
    fc_bias = jax.random.normal(k_b, (num_classes,), jnp.float32) * 0.1

    input_ids = jax.random.randint(k_ids, (batch, seq_len), 0, vocab_size, jnp.int32)

    logits = bert_forward(input_ids, emb_table, fc_weight, fc_bias)
    logits = jax.block_until_ready(logits)

    ref = reference_forward(input_ids, emb_table, fc_weight, fc_bias)
    assert logits.shape == (batch, num_classes)
    assert jnp.allclose(logits, ref, atol=1e-2, rtol=1e-2), (logits, ref)

    print("KERNEL_OK")
</pallas_src>

<mosaic_0001>
module attributes {stable_mosaic.version = 11 : i64} {
  func.func @_bert_kernel(%arg0: i32, %arg1: memref<8x8xi32, #tpu.memory_space<smem>>, %arg2: memref<64x256xf32, #tpu.memory_space<any>>, %arg3: memref<256x128xf32, #tpu.memory_space<vmem>>, %arg4: memref<1x128xf32, #tpu.memory_space<vmem>>, %arg5: memref<8x128xf32, #tpu.memory_space<vmem>>, %arg6: memref<8x256xf32, #tpu.memory_space<vmem>>, %arg7: memref<4x8x256xf32, #tpu.memory_space<vmem>>, %arg8: memref<4x8x!tpu.dma_semaphore, #tpu.memory_space<semaphore_mem>>) attributes {dimension_semantics = [#tpu.dimension_semantics<parallel>], iteration_bounds = array<i64: 1>, scalar_prefetch = 1 : i64, scratch_operands = 3 : i64, tpu.core_type = #tpu.core_type<tc>, window_params = [{}, {pipeline_mode = #tpu.pipeline_mode<synchronous>, transform_indices = @transform_1, window_bounds = array<i64: 256, 128>}, {pipeline_mode = #tpu.pipeline_mode<synchronous>, transform_indices = @transform_2, window_bounds = array<i64: 1, 128>}, {transform_indices = @transform_3, window_bounds = array<i64: 8, 128>}]} {
    %c8_i32 = arith.constant 8 : i32
    %0 = arith.muli %arg0, %c8_i32 : i32
    %cst = arith.constant 0.000000e+00 : f32
    %1 = vector.broadcast %cst : f32 to vector<8x256xf32>
    %c0 = arith.constant 0 : index
    %c0_0 = arith.constant 0 : index
    %2 = vector.load %arg6[%c0, %c0_0] : memref<8x256xf32, #tpu.memory_space<vmem>>, vector<8x256xf32>
    tpu.vector_store %arg6[%c0, %c0_0], %1 {strides = array<i32>} : memref<8x256xf32, #tpu.memory_space<vmem>>, vector<8x256xf32>,
    %c0_i32 = arith.constant 0 : i32
    %3 = arith.addi %0, %c0_i32 : i32
    %4 = arith.index_cast %3 : i32 to index
    %c0_1 = arith.constant 0 : index
    %5 = memref.load %arg1[%4, %c0_1] : memref<8x8xi32, #tpu.memory_space<smem>>
    %c0_i32_2 = arith.constant 0 : i32
    %c0_i32_3 = arith.constant 0 : i32
    %c0_i32_4 = arith.constant 0 : i32
    %c0_i32_5 = arith.constant 0 : i32
    %6 = tpu.memref_slice %arg2[%5, %c0_i32_5] : memref<64x256xf32, #tpu.memory_space<any>> -> memref<1x256xf32, #tpu.memory_space<any>>
    %c0_i32_6 = arith.constant 0 : i32
    %c0_i32_7 = arith.constant 0 : i32
    %7 = tpu.memref_slice %arg7[%c0_i32_2, %c0_i32_6, %c0_i32_7] : memref<4x8x256xf32, #tpu.memory_space<vmem>> -> memref<1x1x256xf32, #tpu.memory_space<vmem>>
    %8 = tpu.memref_squeeze %7 : memref<1x1x256xf32, #tpu.memory_space<vmem>> -> memref<1x256xf32, #tpu.memory_space<vmem>>
    %9 = tpu.memref_slice %arg8[%c0_i32_3, %c0_i32_4] : memref<4x8x!tpu.dma_semaphore, #tpu.memory_space<semaphore_mem>> -> memref<1x1x!tpu.dma_semaphore, #tpu.memory_space<semaphore_mem>>
    %10 = tpu.memref_squeeze %9 : memref<1x1x!tpu.dma_semaphore, #tpu.memory_space<semaphore_mem>> -> memref<!tpu.dma_semaphore, #tpu.memory_space<semaphore_mem>>
    tpu.enqueue_dma source(%6 : memref<1x256xf32, #tpu.memory_space<any>>) target(%8 : memref<1x256xf32, #tpu.memory_space<vmem>>) target_semaphore(%10 : memref<!tpu.dma_semaphore, #tpu.memory_space<semaphore_mem>>)
    %c1_i32 = arith.constant 1 : i32
    %11 = arith.addi %0, %c1_i32 : i32
    %12 = arith.index_cast %11 : i32 to index
    %c0_8 = arith.constant 0 : index
    %13 = memref.load %arg1[%12, %c0_8] : memref<8x8xi32, #tpu.memory_space<smem>>
    %c0_i32_9 = arith.constant 0 : i32
    %c0_i32_10 = arith.constant 0 : i32
    %c1_i32_11 = arith.constant 1 : i32
    %c0_i32_12 = arith.constant 0 : i32
    %14 = tpu.memref_slice %arg2[%13, %c0_i32_12] : memref<64x256xf32, #tpu.memory_space<any>> -> memref<1x256xf32, #tpu.memory_space<any>>
    %c1_i32_13 = arith.constant 1 : i32
    %c0_i32_14 = arith.constant 0 : i32
    %15 = tpu.memref_slice %arg7[%c0_i32_9, %c1_i32_13, %c0_i32_14] : memref<4x8x256xf32, #tpu.memory_space<vmem>> -> memref<1x1x256xf32, #tpu.memory_space<vmem>>
    %16 = tpu.memref_squeeze %15 : memref<1x1x256xf32, #tpu.memory_space<vmem>> -> memref<1x256xf32, #tpu.memory_space<vmem>>
    %17 = tpu.memref_slice %arg8[%c0_i32_10, %c1_i32_11] : memref<4x8x!tpu.dma_semaphore, #tpu.memory_space<semaphore_mem>> -> memref<1x1x!tpu.dma_semaphore, #tpu.memory_space<semaphore_mem>>
    %18 = tpu.memref_squeeze %17 : memref<1x1x!tpu.dma_semaphore, #tpu.memory_space<semaphore_mem>> -> memref<!tpu.dma_semaphore, #tpu.memory_space<semaphore_mem>>
    tpu.enqueue_dma source(%14 : memref<1x256xf32, #tpu.memory_space<any>>) target(%16 : memref<1x256xf32, #tpu.memory_space<vmem>>) target_semaphore(%18 : memref<!tpu.dma_semaphore, #tpu.memory_space<semaphore_mem>>)
    %c2_i32 = arith.constant 2 : i32
    %19 = arith.addi %0, %c2_i32 : i32
    %20 = arith.index_cast %19 : i32 to index
    %c0_15 = arith.constant 0 : index
    %21 = memref.load %arg1[%20, %c0_15] : memref<8x8xi32, #tpu.memory_space<smem>>
    %c0_i32_16 = arith.constant 0 : i32
    %c0_i32_17 = arith.constant 0 : i32
    %c2_i32_18 = arith.constant 2 : i32
    %c0_i32_19 = arith.constant 0 : i32
    %22 = tpu.memref_slice %arg2[%21, %c0_i32_19] : memref<64x256xf32, #tpu.memory_space<any>> -> memref<1x256xf32, #tpu.memory_space<any>>
    %c2_i32_20 = arith.constant 2 : i32
    %c0_i32_21 = arith.constant 0 : i32
    %23 = tpu.memref_slice %arg7[%c0_i32_16, %c2_i32_20, %c0_i32_21] : memref<4x8x256xf32, #tpu.memory_space<vmem>> -> memref<1x1x256xf32, #tpu.memory_space<vmem>>
    %24 = tpu.memref_squeeze %23 : memref<1x1x256xf32, #tpu.memory_space<vmem>> -> memref<1x256xf32, #tpu.memory_space<vmem>>
    %25 = tpu.memref_slice %arg8[%c0_i32_17, %c2_i32_18] : memref<4x8x!tpu.dma_semaphore, #tpu.memory_space<semaphore_mem>> -> memref<1x1x!tpu.dma_semaphore, #tpu.memory_space<semaphore_mem>>
    %26 = tpu.memref_squeeze %25 : memref<1x1x!tpu.dma_semaphore, #tpu.memory_space<semaphore_mem>> -> memref<!tpu.dma_semaphore, #tpu.memory_space<semaphore_mem>>
    tpu.enqueue_dma source(%22 : memref<1x256xf32, #tpu.memory_space<any>>) target(%24 : memref<1x256xf32, #tpu.memory_space<vmem>>) target_semaphore(%26 : memref<!tpu.dma_semaphore, #tpu.memory_space<semaphore_mem>>)
    %c3_i32 = arith.constant 3 : i32
    %27 = arith.addi %0, %c3_i32 : i32
    %28 = arith.index_cast %27 : i32 to index
    %c0_22 = arith.constant 0 : index
    %29 = memref.load %arg1[%28, %c0_22] : memref<8x8xi32, #tpu.memory_space<smem>>
    %c0_i32_23 = arith.constant 0 : i32
    %c0_i32_24 = arith.constant 0 : i32
    %c3_i32_25 = arith.constant 3 : i32
    %c0_i32_26 = arith.constant 0 : i32
    %30 = tpu.memref_slice %arg2[%29, %c0_i32_26] : memref<64x256xf32, #tpu.memory_space<any>> -> memref<1x256xf32, #tpu.memory_space<any>>
    %c3_i32_27 = arith.constant 3 : i32
    %c0_i32_28 = arith.constant 0 : i32
    %31 = tpu.memref_slice %arg7[%c0_i32_23, %c3_i32_27, %c0_i32_28] : memref<4x8x256xf32, #tpu.memory_space<vmem>> -> memref<1x1x256xf32, #tpu.memory_space<vmem>>
    %32 = tpu.memref_squeeze %31 : memref<1x1x256xf32, #tpu.memory_space<vmem>> -> memref<1x256xf32, #tpu.memory_space<vmem>>
    %33 = tpu.memref_slice %arg8[%c0_i32_24, %c3_i32_25] : memref<4x8x!tpu.dma_semaphore, #tpu.memory_space<semaphore_mem>> -> memref<1x1x!tpu.dma_semaphore, #tpu.memory_space<semaphore_mem>>
    %34 = tpu.memref_squeeze %33 : memref<1x1x!tpu.dma_semaphore, #tpu.memory_space<semaphore_mem>> -> memref<!tpu.dma_semaphore, #tpu.memory_space<semaphore_mem>>
    tpu.enqueue_dma source(%30 : memref<1x256xf32, #tpu.memory_space<any>>) target(%32 : memref<1x256xf32, #tpu.memory_space<vmem>>) target_semaphore(%34 : memref<!tpu.dma_semaphore, #tpu.memory_space<semaphore_mem>>)
    %c4_i32 = arith.constant 4 : i32
    %35 = arith.addi %0, %c4_i32 : i32
    %36 = arith.index_cast %35 : i32 to index
    %c0_29 = arith.constant 0 : index
    %37 = memref.load %arg1[%36, %c0_29] : memref<8x8xi32, #tpu.memory_space<smem>>
    %c0_i32_30 = arith.constant 0 : i32
    %c0_i32_31 = arith.constant 0 : i32
    %c4_i32_32 = arith.constant 4 : i32
    %c0_i32_33 = arith.constant 0 : i32
    %38 = tpu.memref_slice %arg2[%37, %c0_i32_33] : memref<64x256xf32, #tpu.memory_space<any>> -> memref<1x256xf32, #tpu.memory_space<any>>
    %c4_i32_34 = arith.constant 4 : i32
    %c0_i32_35 = arith.constant 0 : i32
    %39 = tpu.memref_slice %arg7[%c0_i32_30, %c4_i32_34, %c0_i32_35] : memref<4x8x256xf32, #tpu.memory_space<vmem>> -> memref<1x1x256xf32, #tpu.memory_space<vmem>>
    %40 = tpu.memref_squeeze %39 : memref<1x1x256xf32, #tpu.memory_space<vmem>> -> memref<1x256xf32, #tpu.memory_space<vmem>>
    %41 = tpu.memref_slice %arg8[%c0_i32_31, %c4_i32_32] : memref<4x8x!tpu.dma_semaphore, #tpu.memory_space<semaphore_mem>> -> memref<1x1x!tpu.dma_semaphore, #tpu.memory_space<semaphore_mem>>
    %42 = tpu.memref_squeeze %41 : memref<1x1x!tpu.dma_semaphore, #tpu.memory_space<semaphore_mem>> -> memref<!tpu.dma_semaphore, #tpu.memory_space<semaphore_mem>>
    tpu.enqueue_dma source(%38 : memref<1x256xf32, #tpu.memory_space<any>>) target(%40 : memref<1x256xf32, #tpu.memory_space<vmem>>) target_semaphore(%42 : memref<!tpu.dma_semaphore, #tpu.memory_space<semaphore_mem>>)
    %c5_i32 = arith.constant 5 : i32
    %43 = arith.addi %0, %c5_i32 : i32
    %44 = arith.index_cast %43 : i32 to index
    %c0_36 = arith.constant 0 : index
    %45 = memref.load %arg1[%44, %c0_36] : memref<8x8xi32, #tpu.memory_space<smem>>
    %c0_i32_37 = arith.constant 0 : i32
    %c0_i32_38 = arith.constant 0 : i32
    %c5_i32_39 = arith.constant 5 : i32
    %c0_i32_40 = arith.constant 0 : i32
    %46 = tpu.memref_slice %arg2[%45, %c0_i32_40] : memref<64x256xf32, #tpu.memory_space<any>> -> memref<1x256xf32, #tpu.memory_space<any>>
    %c5_i32_41 = arith.constant 5 : i32
    %c0_i32_42 = arith.constant 0 : i32
    %47 = tpu.memref_slice %arg7[%c0_i32_37, %c5_i32_41, %c0_i32_42] : memref<4x8x256xf32, #tpu.memory_space<vmem>> -> memref<1x1x256xf32, #tpu.memory_space<vmem>>
    %48 = tpu.memref_squeeze %47 : memref<1x1x256xf32, #tpu.memory_space<vmem>> -> memref<1x256xf32, #tpu.memory_space<vmem>>
    %49 = tpu.memref_slice %arg8[%c0_i32_38, %c5_i32_39] : memref<4x8x!tpu.dma_semaphore, #tpu.memory_space<semaphore_mem>> -> memref<1x1x!tpu.dma_semaphore, #tpu.memory_space<semaphore_mem>>
    %50 = tpu.memref_squeeze %49 : memref<1x1x!tpu.dma_semaphore, #tpu.memory_space<semaphore_mem>> -> memref<!tpu.dma_semaphore, #tpu.memory_space<semaphore_mem>>
    tpu.enqueue_dma source(%46 : memref<1x256xf32, #tpu.memory_space<any>>) target(%48 : memref<1x256xf32, #tpu.memory_space<vmem>>) target_semaphore(%50 : memref<!tpu.dma_semaphore, #tpu.memory_space<semaphore_mem>>)
    %c6_i32 = arith.constant 6 : i32
    %51 = arith.addi %0, %c6_i32 : i32
    %52 = arith.index_cast %51 : i32 to index
    %c0_43 = arith.constant 0 : index
    %53 = memref.load %arg1[%52, %c0_43] : memref<8x8xi32, #tpu.memory_space<smem>>
    %c0_i32_44 = arith.constant 0 : i32
    %c0_i32_45 = arith.constant 0 : i32
    %c6_i32_46 = arith.constant 6 : i32
    %c0_i32_47 = arith.constant 0 : i32
    %54 = tpu.memref_slice %arg2[%53, %c0_i32_47] : memref<64x256xf32, #tpu.memory_space<any>> -> memref<1x256xf32, #tpu.memory_space<any>>
    %c6_i32_48 = arith.constant 6 : i32
    %c0_i32_49 = arith.constant 0 : i32
    %55 = tpu.memref_slice %arg7[%c0_i32_44, %c6_i32_48, %c0_i32_49] : memref<4x8x256xf32, #tpu.memory_space<vmem>> -> memref<1x1x256xf32, #tpu.memory_space<vmem>>
    %56 = tpu.memref_squeeze %55 : memref<1x1x256xf32, #tpu.memory_space<vmem>> -> memref<1x256xf32, #tpu.memory_space<vmem>>
    %57 = tpu.memref_slice %arg8[%c0_i32_45, %c6_i32_46] : memref<4x8x!tpu.dma_semaphore, #tpu.memory_space<semaphore_mem>> -> memref<1x1x!tpu.dma_semaphore, #tpu.memory_space<semaphore_mem>>
    %58 = tpu.memref_squeeze %57 : memref<1x1x!tpu.dma_semaphore, #tpu.memory_space<semaphore_mem>> -> memref<!tpu.dma_semaphore, #tpu.memory_space<semaphore_mem>>
    tpu.enqueue_dma source(%54 : memref<1x256xf32, #tpu.memory_space<any>>) target(%56 : memref<1x256xf32, #tpu.memory_space<vmem>>) target_semaphore(%58 : memref<!tpu.dma_semaphore, #tpu.memory_space<semaphore_mem>>)
    %c7_i32 = arith.constant 7 : i32
    %59 = arith.addi %0, %c7_i32 : i32
    %60 = arith.index_cast %59 : i32 to index
    %c0_50 = arith.constant 0 : index
    %61 = memref.load %arg1[%60, %c0_50] : memref<8x8xi32, #tpu.memory_space<smem>>
    %c0_i32_51 = arith.constant 0 : i32
    %c0_i32_52 = arith.constant 0 : i32
    %c7_i32_53 = arith.constant 7 : i32
    %c0_i32_54 = arith.constant 0 : i32
    %62 = tpu.memref_slice %arg2[%61, %c0_i32_54] : memref<64x256xf32, #tpu.memory_space<any>> -> memref<1x256xf32, #tpu.memory_space<any>>
    %c7_i32_55 = arith.constant 7 : i32
    %c0_i32_56 = arith.constant 0 : i32
    %63 = tpu.memref_slice %arg7[%c0_i32_51, %c7_i32_55, %c0_i32_56] : memref<4x8x256xf32, #tpu.memory_space<vmem>> -> memref<1x1x256xf32, #tpu.memory_space<vmem>>
    %64 = tpu.memref_squeeze %63 : memref<1x1x256xf32, #tpu.memory_space<vmem>> -> memref<1x256xf32, #tpu.memory_space<vmem>>
    %65 = tpu.memref_slice %arg8[%c0_i32_52, %c7_i32_53] : memref<4x8x!tpu.dma_semaphore, #tpu.memory_space<semaphore_mem>> -> memref<1x1x!tpu.dma_semaphore, #tpu.memory_space<semaphore_mem>>
    %66 = tpu.memref_squeeze %65 : memref<1x1x!tpu.dma_semaphore, #tpu.memory_space<semaphore_mem>> -> memref<!tpu.dma_semaphore, #tpu.memory_space<semaphore_mem>>
    tpu.enqueue_dma source(%62 : memref<1x256xf32, #tpu.memory_space<any>>) target(%64 : memref<1x256xf32, #tpu.memory_space<vmem>>) target_semaphore(%66 : memref<!tpu.dma_semaphore, #tpu.memory_space<semaphore_mem>>)
    %c0_i32_57 = arith.constant 0 : i32
    %67 = arith.addi %0, %c0_i32_57 : i32
    %68 = arith.index_cast %67 : i32 to index
    %c1 = arith.constant 1 : index
    %69 = memref.load %arg1[%68, %c1] : memref<8x8xi32, #tpu.memory_space<smem>>
    %c1_i32_58 = arith.constant 1 : i32
    %c1_i32_59 = arith.constant 1 : i32
    %c0_i32_60 = arith.constant 0 : i32
    %c0_i32_61 = arith.constant 0 : i32
    %70 = tpu.memref_slice %arg2[%69, %c0_i32_61] : memref<64x256xf32, #tpu.memory_space<any>> -> memref<1x256xf32, #tpu.memory_space<any>>
    %c0_i32_62 = arith.constant 0 : i32
    %c0_i32_63 = arith.constant 0 : i32
    %71 = tpu.memref_slice %arg7[%c1_i32_58, %c0_i32_62, %c0_i32_63] : memref<4x8x256xf32, #tpu.memory_space<vmem>> -> memref<1x1x256xf32, #tpu.memory_space<vmem>>
    %72 = tpu.memref_squeeze %71 : memref<1x1x256xf32, #tpu.memory_space<vmem>> -> memref<1x256xf32, #tpu.memory_space<vmem>>
    %73 = tpu.memref_slice %arg8[%c1_i32_59, %c0_i32_60] : memref<4x8x!tpu.dma_semaphore, #tpu.memory_space<semaphore_mem>> -> memref<1x1x!tpu.dma_semaphore, #tpu.memory_space<semaphore_mem>>
    %74 = tpu.memref_squeeze %73 : memref<1x1x!tpu.dma_semaphore, #tpu.memory_space<semaphore_mem>> -> memref<!tpu.dma_semaphore, #tpu.memory_space<semaphore_mem>>
    tpu.enqueue_dma source(%70 : memref<1x256xf32, #tpu.memory_space<any>>) target(%72 : memref<1x256xf32, #tpu.memory_space<vmem>>) target_semaphore(%74 : memref<!tpu.dma_semaphore, #tpu.memory_space<semaphore_mem>>)
    %c1_i32_64 = arith.constant 1 : i32
    %75 = arith.addi %0, %c1_i32_64 : i32
    %76 = arith.index_cast %75 : i32 to index
    %c1_65 = arith.constant 1 : index
    %77 = memref.load %arg1[%76, %c1_65] : memref<8x8xi32, #tpu.memory_space<smem>>
    %c1_i32_66 = arith.constant 1 : i32
    %c1_i32_67 = arith.constant 1 : i32
    %c1_i32_68 = arith.constant 1 : i32
    %c0_i32_69 = arith.constant 0 : i32
    %78 = tpu.memref_slice %arg2[%77, %c0_i32_69] : memref<64x256xf32, #tpu.memory_space<any>> -> memref<1x256xf32, #tpu.memory_space<any>>
    %c1_i32_70 = arith.constant 1 : i32
    %c0_i32_71 = arith.constant 0 : i32
    %79 = tpu.memref_slice %arg7[%c1_i32_66, %c1_i32_70, %c0_i32_71] : memref<4x8x256xf32, #tpu.memory_space<vmem>> -> memref<1x1x256xf32, #tpu.memory_space<vmem>>
    %80 = tpu.memref_squeeze %79 : memref<1x1x256xf32, #tpu.memory_space<vmem>> -> memref<1x256xf32, #tpu.memory_space<vmem>>
    %81 = tpu.memref_slice %arg8[%c1_i32_67, %c1_i32_68] : memref<4x8x!tpu.dma_semaphore, #tpu.memory_space<semaphore_mem>> -> memref<1x1x!tpu.dma_semaphore, #tpu.memory_space<semaphore_mem>>
    %82 = tpu.memref_squeeze %81 : memref<1x1x!tpu.dma_semaphore, #tpu.memory_space<semaphore_mem>> -> memref<!tpu.dma_semaphore, #tpu.memory_space<semaphore_mem>>
    tpu.enqueue_dma source(%78 : memref<1x256xf32, #tpu.memory_space<any>>) target(%80 : memref<1x256xf32, #tpu.memory_space<vmem>>) target_semaphore(%82 : memref<!tpu.dma_semaphore, #tpu.memory_space<semaphore_mem>>)
    %c2_i32_72 = arith.constant 2 : i32
    %83 = arith.addi %0, %c2_i32_72 : i32
    %84 = arith.index_cast %83 : i32 to index
    %c1_73 = arith.constant 1 : index
    %85 = memref.load %arg1[%84, %c1_73] : memref<8x8xi32, #tpu.memory_space<smem>>
    %c1_i32_74 = arith.constant 1 : i32
    %c1_i32_75 = arith.constant 1 : i32
    %c2_i32_76 = arith.constant 2 : i32
    %c0_i32_77 = arith.constant 0 : i32
    %86 = tpu.memref_slice %arg2[%85, %c0_i32_77] : memref<64x256xf32, #tpu.memory_space<any>> -> memref<1x256xf32, #tpu.memory_space<any>>
    %c2_i32_78 = arith.constant 2 : i32
    %c0_i32_79 = arith.constant 0 : i32
    %87 = tpu.memref_slice %arg7[%c1_i32_74, %c2_i32_78, %c0_i32_79] : memref<4x8x256xf32, #tpu.memory_space<vmem>> -> memref<1x1x256xf32, #tpu.memory_space<vmem>>
    %88 = tpu.memref_squeeze %87 : memref<1x1x256xf32, #tpu.memory_space<vmem>> -> memref<1x256xf32, #tpu.memory_space<vmem>>
    %89 = tpu.memref_slice %arg8[%c1_i32_75, %c2_i32_76] : memref<4x8x!tpu.dma_semaphore, #tpu.memory_space<semaphore_mem>> -> memref<1x1x!tpu.dma_semaphore, #tpu.memory_space<semaphore_mem>>
    %90 = tpu.memref_squeeze %89 : memref<1x1x!tpu.dma_semaphore, #tpu.memory_space<semaphore_mem>> -> memref<!tpu.dma_semaphore, #tpu.memory_space<semaphore_mem>>
    tpu.enqueue_dma source(%86 : memref<1x256xf32, #tpu.memory_space<any>>) target(%88 : memref<1x256xf32, #tpu.memory_space<vmem>>) target_semaphore(%90 : memref<!tpu.dma_semaphore, #tpu.memory_space<semaphore_mem>>)
    %c3_i32_80 = arith.constant 3 : i32
    %91 = arith.addi %0, %c3_i32_80 : i32
    %92 = arith.index_cast %91 : i32 to index
    %c1_81 = arith.constant 1 : index
    %93 = memref.load %arg1[%92, %c1_81] : memref<8x8xi32, #tpu.memory_space<smem>>
    %c1_i32_82 = arith.constant 1 : i32
    %c1_i32_83 = arith.constant 1 : i32
    %c3_i32_84 = arith.constant 3 : i32
    %c0_i32_85 = arith.constant 0 : i32
    %94 = tpu.memref_slice %arg2[%93, %c0_i32_85] : memref<64x256xf32, #tpu.memory_space<any>> -> memref<1x256xf32, #tpu.memory_space<any>>
    %c3_i32_86 = arith.constant 3 : i32
    %c0_i32_87 = arith.constant 0 : i32
    %95 = tpu.memref_slice %arg7[%c1_i32_82, %c3_i32_86, %c0_i32_87] : memref<4x8x256xf32, #tpu.memory_space<vmem>> -> memref<1x1x256xf32, #tpu.memory_space<vmem>>
    %96 = tpu.memref_squeeze %95 : memref<1x1x256xf32, #tpu.memory_space<vmem>> -> memref<1x256xf32, #tpu.memory_space<vmem>>
    %97 = tpu.memref_slice %arg8[%c1_i32_83, %c3_i32_84] : memref<4x8x!tpu.dma_semaphore, #tpu.memory_space<semaphore_mem>> -> memref<1x1x!tpu.dma_semaphore, #tpu.memory_space<semaphore_mem>>
    %98 = tpu.memref_squeeze %97 : memref<1x1x!tpu.dma_semaphore, #tpu.memory_space<semaphore_mem>> -> memref<!tpu.dma_semaphore, #tpu.memory_space<semaphore_mem>>
    tpu.enqueue_dma source(%94 : memref<1x256xf32, #tpu.memory_space<any>>) target(%96 : memref<1x256xf32, #tpu.memory_space<vmem>>) target_semaphore(%98 : memref<!tpu.dma_semaphore, #tpu.memory_space<semaphore_mem>>)
    %c4_i32_88 = arith.constant 4 : i32
    %99 = arith.addi %0, %c4_i32_88 : i32
    %100 = arith.index_cast %99 : i32 to index
    %c1_89 = arith.constant 1 : index
    %101 = memref.load %arg1[%100, %c1_89] : memref<8x8xi32, #tpu.memory_space<smem>>
    %c1_i32_90 = arith.constant 1 : i32
    %c1_i32_91 = arith.constant 1 : i32
    %c4_i32_92 = arith.constant 4 : i32
    %c0_i32_93 = arith.constant 0 : i32
    %102 = tpu.memref_slice %arg2[%101, %c0_i32_93] : memref<64x256xf32, #tpu.memory_space<any>> -> memref<1x256xf32, #tpu.memory_space<any>>
    %c4_i32_94 = arith.constant 4 : i32
    %c0_i32_95 = arith.constant 0 : i32
    %103 = tpu.memref_slice %arg7[%c1_i32_90, %c4_i32_94, %c0_i32_95] : memref<4x8x256xf32, #tpu.memory_space<vmem>> -> memref<1x1x256xf32, #tpu.memory_space<vmem>>
    %104 = tpu.memref_squeeze %103 : memref<1x1x256xf32, #tpu.memory_space<vmem>> -> memref<1x256xf32, #tpu.memory_space<vmem>>
    %105 = tpu.memref_slice %arg8[%c1_i32_91, %c4_i32_92] : memref<4x8x!tpu.dma_semaphore, #tpu.memory_space<semaphore_mem>> -> memref<1x1x!tpu.dma_semaphore, #tpu.memory_space<semaphore_mem>>
    %106 = tpu.memref_squeeze %105 : memref<1x1x!tpu.dma_semaphore, #tpu.memory_space<semaphore_mem>> -> memref<!tpu.dma_semaphore, #tpu.memory_space<semaphore_mem>>
    tpu.enqueue_dma source(%102 : memref<1x256xf32, #tpu.memory_space<any>>) target(%104 : memref<1x256xf32, #tpu.memory_space<vmem>>) target_semaphore(%106 : memref<!tpu.dma_semaphore, #tpu.memory_space<semaphore_mem>>)
    %c5_i32_96 = arith.constant 5 : i32
    %107 = arith.addi %0, %c5_i32_96 : i32
    %108 = arith.index_cast %107 : i32 to index
    %c1_97 = arith.constant 1 : index
    %109 = memref.load %arg1[%108, %c1_97] : memref<8x8xi32, #tpu.memory_space<smem>>
    %c1_i32_98 = arith.constant 1 : i32
    %c1_i32_99 = arith.constant 1 : i32
    %c5_i32_100 = arith.constant 5 : i32
    %c0_i32_101 = arith.constant 0 : i32
    %110 = tpu.memref_slice %arg2[%109, %c0_i32_101] : memref<64x256xf32, #tpu.memory_space<any>> -> memref<1x256xf32, #tpu.memory_space<any>>
    %c5_i32_102 = arith.constant 5 : i32
    %c0_i32_103 = arith.constant 0 : i32
    %111 = tpu.memref_slice %arg7[%c1_i32_98, %c5_i32_102, %c0_i32_103] : memref<4x8x256xf32, #tpu.memory_space<vmem>> -> memref<1x1x256xf32, #tpu.memory_space<vmem>>
    %112 = tpu.memref_squeeze %111 : memref<1x1x256xf32, #tpu.memory_space<vmem>> -> memref<1x256xf32, #tpu.memory_space<vmem>>
    %113 = tpu.memref_slice %arg8[%c1_i32_99, %c5_i32_100] : memref<4x8x!tpu.dma_semaphore, #tpu.memory_space<semaphore_mem>> -> memref<1x1x!tpu.dma_semaphore, #tpu.memory_space<semaphore_mem>>
    %114 = tpu.memref_squeeze %113 : memref<1x1x!tpu.dma_semaphore, #tpu.memory_space<semaphore_mem>> -> memref<!tpu.dma_semaphore, #tpu.memory_space<semaphore_mem>>
    tpu.enqueue_dma source(%110 : memref<1x256xf32, #tpu.memory_space<any>>) target(%112 : memref<1x256xf32, #tpu.memory_space<vmem>>) target_semaphore(%114 : memref<!tpu.dma_semaphore, #tpu.memory_space<semaphore_mem>>)
    %c6_i32_104 = arith.constant 6 : i32
    %115 = arith.addi %0, %c6_i32_104 : i32
    %116 = arith.index_cast %115 : i32 to index
    %c1_105 = arith.constant 1 : index
    %117 = memref.load %arg1[%116, %c1_105] : memref<8x8xi32, #tpu.memory_space<smem>>
    %c1_i32_106 = arith.constant 1 : i32
    %c1_i32_107 = arith.constant 1 : i32
    %c6_i32_108 = arith.constant 6 : i32
    %c0_i32_109 = arith.constant 0 : i32
    %118 = tpu.memref_slice %arg2[%117, %c0_i32_109] : memref<64x256xf32, #tpu.memory_space<any>> -> memref<1x256xf32, #tpu.memory_space<any>>
    %c6_i32_110 = arith.constant 6 : i32
    %c0_i32_111 = arith.constant 0 : i32
    %119 = tpu.memref_slice %arg7[%c1_i32_106, %c6_i32_110, %c0_i32_111] : memref<4x8x256xf32, #tpu.memory_space<vmem>> -> memref<1x1x256xf32, #tpu.memory_space<vmem>>
    %120 = tpu.memref_squeeze %119 : memref<1x1x256xf32, #tpu.memory_space<vmem>> -> memref<1x256xf32, #tpu.memory_space<vmem>>
    %121 = tpu.memref_slice %arg8[%c1_i32_107, %c6_i32_108] : memref<4x8x!tpu.dma_semaphore, #tpu.memory_space<semaphore_mem>> -> memref<1x1x!tpu.dma_semaphore, #tpu.memory_space<semaphore_mem>>
    %122 = tpu.memref_squeeze %121 : memref<1x1x!tpu.dma_semaphore, #tpu.memory_space<semaphore_mem>> -> memref<!tpu.dma_semaphore, #tpu.memory_space<semaphore_mem>>
    tpu.enqueue_dma source(%118 : memref<1x256xf32, #tpu.memory_space<any>>) target(%120 : memref<1x256xf32, #tpu.memory_space<vmem>>) target_semaphore(%122 : memref<!tpu.dma_semaphore, #tpu.memory_space<semaphore_mem>>)
    %c7_i32_112 = arith.constant 7 : i32
    %123 = arith.addi %0, %c7_i32_112 : i32
    %124 = arith.index_cast %123 : i32 to index
    %c1_113 = arith.constant 1 : index
    %125 = memref.load %arg1[%124, %c1_113] : memref<8x8xi32, #tpu.memory_space<smem>>
    %c1_i32_114 = arith.constant 1 : i32
    %c1_i32_115 = arith.constant 1 : i32
    %c7_i32_116 = arith.constant 7 : i32
    %c0_i32_117 = arith.constant 0 : i32
    %126 = tpu.memref_slice %arg2[%125, %c0_i32_117] : memref<64x256xf32, #tpu.memory_space<any>> -> memref<1x256xf32, #tpu.memory_space<any>>
    %c7_i32_118 = arith.constant 7 : i32
    %c0_i32_119 = arith.constant 0 : i32
    %127 = tpu.memref_slice %arg7[%c1_i32_114, %c7_i32_118, %c0_i32_119] : memref<4x8x256xf32, #tpu.memory_space<vmem>> -> memref<1x1x256xf32, #tpu.memory_space<vmem>>
    %128 = tpu.memref_squeeze %127 : memref<1x1x256xf32, #tpu.memory_space<vmem>> -> memref<1x256xf32, #tpu.memory_space<vmem>>
    %129 = tpu.memref_slice %arg8[%c1_i32_115, %c7_i32_116] : memref<4x8x!tpu.dma_semaphore, #tpu.memory_space<semaphore_mem>> -> memref<1x1x!tpu.dma_semaphore, #tpu.memory_space<semaphore_mem>>
    %130 = tpu.memref_squeeze %129 : memref<1x1x!tpu.dma_semaphore, #tpu.memory_space<semaphore_mem>> -> memref<!tpu.dma_semaphore, #tpu.memory_space<semaphore_mem>>
    tpu.enqueue_dma source(%126 : memref<1x256xf32, #tpu.memory_space<any>>) target(%128 : memref<1x256xf32, #tpu.memory_space<vmem>>) target_semaphore(%130 : memref<!tpu.dma_semaphore, #tpu.memory_space<semaphore_mem>>)
    %c0_i32_120 = arith.constant 0 : i32
    %131 = arith.addi %0, %c0_i32_120 : i32
    %132 = arith.index_cast %131 : i32 to index
    %c2 = arith.constant 2 : index
    %133 = memref.load %arg1[%132, %c2] : memref<8x8xi32, #tpu.memory_space<smem>>
    %c2_i32_121 = arith.constant 2 : i32
    %c2_i32_122 = arith.constant 2 : i32
    %c0_i32_123 = arith.constant 0 : i32
    %c0_i32_124 = arith.constant 0 : i32
    %134 = tpu.memref_slice %arg2[%133, %c0_i32_124] : memref<64x256xf32, #tpu.memory_space<any>> -> memref<1x256xf32, #tpu.memory_space<any>>
    %c0_i32_125 = arith.constant 0 : i32
    %c0_i32_126 = arith.constant 0 : i32
    %135 = tpu.memref_slice %arg7[%c2_i32_121, %c0_i32_125, %c0_i32_126] : memref<4x8x256xf32, #tpu.memory_space<vmem>> -> memref<1x1x256xf32, #tpu.memory_space<vmem>>
    %136 = tpu.memref_squeeze %135 : memref<1x1x256xf32, #tpu.memory_space<vmem>> -> memref<1x256xf32, #tpu.memory_space<vmem>>
    %137 = tpu.memref_slice %arg8[%c2_i32_122, %c0_i32_123] : memref<4x8x!tpu.dma_semaphore, #tpu.memory_space<semaphore_mem>> -> memref<1x1x!tpu.dma_semaphore, #tpu.memory_space<semaphore_mem>>
    %138 = tpu.memref_squeeze %137 : memref<1x1x!tpu.dma_semaphore, #tpu.memory_space<semaphore_mem>> -> memref<!tpu.dma_semaphore, #tpu.memory_space<semaphore_mem>>
    tpu.enqueue_dma source(%134 : memref<1x256xf32, #tpu.memory_space<any>>) target(%136 : memref<1x256xf32, #tpu.memory_space<vmem>>) target_semaphore(%138 : memref<!tpu.dma_semaphore, #tpu.memory_space<semaphore_mem>>)
    %c1_i32_127 = arith.constant 1 : i32
    %139 = arith.addi %0, %c1_i32_127 : i32
    %140 = arith.index_cast %139 : i32 to index
    %c2_128 = arith.constant 2 : index
    %141 = memref.load %arg1[%140, %c2_128] : memref<8x8xi32, #tpu.memory_space<smem>>
    %c2_i32_129 = arith.constant 2 : i32
    %c2_i32_130 = arith.constant 2 : i32
    %c1_i32_131 = arith.constant 1 : i32
    %c0_i32_132 = arith.constant 0 : i32
    %142 = tpu.memref_slice %arg2[%141, %c0_i32_132] : memref<64x256xf32, #tpu.memory_space<any>> -> memref<1x256xf32, #tpu.memory_space<any>>
    %c1_i32_133 = arith.constant 1 : i32
    %c0_i32_134 = arith.constant 0 : i32
    %143 = tpu.memref_slice %arg7[%c2_i32_129, %c1_i32_133, %c0_i32_134] : memref<4x8x256xf32, #tpu.memory_space<vmem>> -> memref<1x1x256xf32, #tpu.memory_space<vmem>>
    %144 = tpu.memref_squeeze %143 : memref<1x1x256xf32, #tpu.memory_space<vmem>> -> memref<1x256xf32, #tpu.memory_space<vmem>>
    %145 = tpu.memref_slice %arg8[%c2_i32_130, %c1_i32_131] : memref<4x8x!tpu.dma_semaphore, #tpu.memory_space<semaphore_mem>> -> memref<1x1x!tpu.dma_semaphore, #tpu.memory_space<semaphore_mem>>
    %146 = tpu.memref_squeeze %145 : memref<1x1x!tpu.dma_semaphore, #tpu.memory_space<semaphore_mem>> -> memref<!tpu.dma_semaphore, #tpu.memory_space<semaphore_mem>>
    tpu.enqueue_dma source(%142 : memref<1x256xf32, #tpu.memory_space<any>>) target(%144 : memref<1x256xf32, #tpu.memory_space<vmem>>) target_semaphore(%146 : memref<!tpu.dma_semaphore, #tpu.memory_space<semaphore_mem>>)
    %c2_i32_135 = arith.constant 2 : i32
    %147 = arith.addi %0, %c2_i32_135 : i32
    %148 = arith.index_cast %147 : i32 to index
    %c2_136 = arith.constant 2 : index
    %149 = memref.load %arg1[%148, %c2_136] : memref<8x8xi32, #tpu.memory_space<smem>>
    %c2_i32_137 = arith.constant 2 : i32
    %c2_i32_138 = arith.constant 2 : i32
    %c2_i32_139 = arith.constant 2 : i32
    %c0_i32_140 = arith.constant 0 : i32
    %150 = tpu.memref_slice %arg2[%149, %c0_i32_140] : memref<64x256xf32, #tpu.memory_space<any>> -> memref<1x256xf32, #tpu.memory_space<any>>
    %c2_i32_141 = arith.constant 2 : i32
    %c0_i32_142 = arith.constant 0 : i32
    %151 = tpu.memref_slice %arg7[%c2_i32_137, %c2_i32_141, %c0_i32_142] : memref<4x8x256xf32, #tpu.memory_space<vmem>> -> memref<1x1x256xf32, #tpu.memory_space<vmem>>
    %152 = tpu.memref_squeeze %151 : memref<1x1x256xf32, #tpu.memory_space<vmem>> -> memref<1x256xf32, #tpu.memory_space<vmem>>
    %153 = tpu.memref_slice %arg8[%c2_i32_138, %c2_i32_139] : memref<4x8x!tpu.dma_semaphore, #tpu.memory_space<semaphore_mem>> -> memref<1x1x!tpu.dma_semaphore, #tpu.memory_space<semaphore_mem>>
    %154 = tpu.memref_squeeze %153 : memref<1x1x!tpu.dma_semaphore, #tpu.memory_space<semaphore_mem>> -> memref<!tpu.dma_semaphore, #tpu.memory_space<semaphore_mem>>
    tpu.enqueue_dma source(%150 : memref<1x256xf32, #tpu.memory_space<any>>) target(%152 : memref<1x256xf32, #tpu.memory_space<vmem>>) target_semaphore(%154 : memref<!tpu.dma_semaphore, #tpu.memory_space<semaphore_mem>>)
    %c3_i32_143 = arith.constant 3 : i32
    %155 = arith.addi %0, %c3_i32_143 : i32
    %156 = arith.index_cast %155 : i32 to index
    %c2_144 = arith.constant 2 : index
    %157 = memref.load %arg1[%156, %c2_144] : memref<8x8xi32, #tpu.memory_space<smem>>
    %c2_i32_145 = arith.constant 2 : i32
    %c2_i32_146 = arith.constant 2 : i32
    %c3_i32_147 = arith.constant 3 : i32
    %c0_i32_148 = arith.constant 0 : i32
    %158 = tpu.memref_slice %arg2[%157, %c0_i32_148] : memref<64x256xf32, #tpu.memory_space<any>> -> memref<1x256xf32, #tpu.memory_space<any>>
    %c3_i32_149 = arith.constant 3 : i32
    %c0_i32_150 = arith.constant 0 : i32
    %159 = tpu.memref_slice %arg7[%c2_i32_145, %c3_i32_149, %c0_i32_150] : memref<4x8x256xf32, #tpu.memory_space<vmem>> -> memref<1x1x256xf32, #tpu.memory_space<vmem>>
    %160 = tpu.memref_squeeze %159 : memref<1x1x256xf32, #tpu.memory_space<vmem>> -> memref<1x256xf32, #tpu.memory_space<vmem>>
    %161 = tpu.memref_slice %arg8[%c2_i32_146, %c3_i32_147] : memref<4x8x!tpu.dma_semaphore, #tpu.memory_space<semaphore_mem>> -> memref<1x1x!tpu.dma_semaphore, #tpu.memory_space<semaphore_mem>>
    %162 = tpu.memref_squeeze %161 : memref<1x1x!tpu.dma_semaphore, #tpu.memory_space<semaphore_mem>> -> memref<!tpu.dma_semaphore, #tpu.memory_space<semaphore_mem>>
    tpu.enqueue_dma source(%158 : memref<1x256xf32, #tpu.memory_space<any>>) target(%160 : memref<1x256xf32, #tpu.memory_space<vmem>>) target_semaphore(%162 : memref<!tpu.dma_semaphore, #tpu.memory_space<semaphore_mem>>)
    %c4_i32_151 = arith.constant 4 : i32
    %163 = arith.addi %0, %c4_i32_151 : i32
    %164 = arith.index_cast %163 : i32 to index
    %c2_152 = arith.constant 2 : index
    %165 = memref.load %arg1[%164, %c2_152] : memref<8x8xi32, #tpu.memory_space<smem>>
    %c2_i32_153 = arith.constant 2 : i32
    %c2_i32_154 = arith.constant 2 : i32
    %c4_i32_155 = arith.constant 4 : i32
    %c0_i32_156 = arith.constant 0 : i32
    %166 = tpu.memref_slice %arg2[%165, %c0_i32_156] : memref<64x256xf32, #tpu.memory_space<any>> -> memref<1x256xf32, #tpu.memory_space<any>>
    %c4_i32_157 = arith.constant 4 : i32
    %c0_i32_158 = arith.constant 0 : i32
    %167 = tpu.memref_slice %arg7[%c2_i32_153, %c4_i32_157, %c0_i32_158] : memref<4x8x256xf32, #tpu.memory_space<vmem>> -> memref<1x1x256xf32, #tpu.memory_space<vmem>>
    %168 = tpu.memref_squeeze %167 : memref<1x1x256xf32, #tpu.memory_space<vmem>> -> memref<1x256xf32, #tpu.memory_space<vmem>>
    %169 = tpu.memref_slice %arg8[%c2_i32_154, %c4_i32_155] : memref<4x8x!tpu.dma_semaphore, #tpu.memory_space<semaphore_mem>> -> memref<1x1x!tpu.dma_semaphore, #tpu.memory_space<semaphore_mem>>
    %170 = tpu.memref_squeeze %169 : memref<1x1x!tpu.dma_semaphore, #tpu.memory_space<semaphore_mem>> -> memref<!tpu.dma_semaphore, #tpu.memory_space<semaphore_mem>>
    tpu.enqueue_dma source(%166 : memref<1x256xf32, #tpu.memory_space<any>>) target(%168 : memref<1x256xf32, #tpu.memory_space<vmem>>) target_semaphore(%170 : memref<!tpu.dma_semaphore, #tpu.memory_space<semaphore_mem>>)
    %c5_i32_159 = arith.constant 5 : i32
    %171 = arith.addi %0, %c5_i32_159 : i32
    %172 = arith.index_cast %171 : i32 to index
    %c2_160 = arith.constant 2 : index
    %173 = memref.load %arg1[%172, %c2_160] : memref<8x8xi32, #tpu.memory_space<smem>>
    %c2_i32_161 = arith.constant 2 : i32
    %c2_i32_162 = arith.constant 2 : i32
    %c5_i32_163 = arith.constant 5 : i32
    %c0_i32_164 = arith.constant 0 : i32
    %174 = tpu.memref_slice %arg2[%173, %c0_i32_164] : memref<64x256xf32, #tpu.memory_space<any>> -> memref<1x256xf32, #tpu.memory_space<any>>
    %c5_i32_165 = arith.constant 5 : i32
    %c0_i32_166 = arith.constant 0 : i32
    %175 = tpu.memref_slice %arg7[%c2_i32_161, %c5_i32_165, %c0_i32_166] : memref<4x8x256xf32, #tpu.memory_space<vmem>> -> memref<1x1x256xf32, #tpu.memory_space<vmem>>
    %176 = tpu.memref_squeeze %175 : memref<1x1x256xf32, #tpu.memory_space<vmem>> -> memref<1x256xf32, #tpu.memory_space<vmem>>
    %177 = tpu.memref_slice %arg8[%c2_i32_162, %c5_i32_163] : memref<4x8x!tpu.dma_semaphore, #tpu.memory_space<semaphore_mem>> -> memref<1x1x!tpu.dma_semaphore, #tpu.memory_space<semaphore_mem>>
    %178 = tpu.memref_squeeze %177 : memref<1x1x!tpu.dma_semaphore, #tpu.memory_space<semaphore_mem>> -> memref<!tpu.dma_semaphore, #tpu.memory_space<semaphore_mem>>
    tpu.enqueue_dma source(%174 : memref<1x256xf32, #tpu.memory_space<any>>) target(%176 : memref<1x256xf32, #tpu.memory_space<vmem>>) target_semaphore(%178 : memref<!tpu.dma_semaphore, #tpu.memory_space<semaphore_mem>>)
    %c6_i32_167 = arith.constant 6 : i32
    %179 = arith.addi %0, %c6_i32_167 : i32
    %180 = arith.index_cast %179 : i32 to index
    %c2_168 = arith.constant 2 : index
    %181 = memref.load %arg1[%180, %c2_168] : memref<8x8xi32, #tpu.memory_space<smem>>
    %c2_i32_169 = arith.constant 2 : i32
    %c2_i32_170 = arith.constant 2 : i32
    %c6_i32_171 = arith.constant 6 : i32
    %c0_i32_172 = arith.constant 0 : i32
    %182 = tpu.memref_slice %arg2[%181, %c0_i32_172] : memref<64x256xf32, #tpu.memory_space<any>> -> memref<1x256xf32, #tpu.memory_space<any>>
    %c6_i32_173 = arith.constant 6 : i32
    %c0_i32_174 = arith.constant 0 : i32
    %183 = tpu.memref_slice %arg7[%c2_i32_169, %c6_i32_173, %c0_i32_174] : memref<4x8x256xf32, #tpu.memory_space<vmem>> -> memref<1x1x256xf32, #tpu.memory_space<vmem>>
    %184 = tpu.memref_squeeze %183 : memref<1x1x256xf32, #tpu.memory_space<vmem>> -> memref<1x256xf32, #tpu.memory_space<vmem>>
    %185 = tpu.memref_slice %arg8[%c2_i32_170, %c6_i32_171] : memref<4x8x!tpu.dma_semaphore, #tpu.memory_space<semaphore_mem>> -> memref<1x1x!tpu.dma_semaphore, #tpu.memory_space<semaphore_mem>>
    %186 = tpu.memref_squeeze %185 : memref<1x1x!tpu.dma_semaphore, #tpu.memory_space<semaphore_mem>> -> memref<!tpu.dma_semaphore, #tpu.memory_space<semaphore_mem>>
    tpu.enqueue_dma source(%182 : memref<1x256xf32, #tpu.memory_space<any>>) target(%184 : memref<1x256xf32, #tpu.memory_space<vmem>>) target_semaphore(%186 : memref<!tpu.dma_semaphore, #tpu.memory_space<semaphore_mem>>)
    %c7_i32_175 = arith.constant 7 : i32
    %187 = arith.addi %0, %c7_i32_175 : i32
    %188 = arith.index_cast %187 : i32 to index
    %c2_176 = arith.constant 2 : index
    %189 = memref.load %arg1[%188, %c2_176] : memref<8x8xi32, #tpu.memory_space<smem>>
    %c2_i32_177 = arith.constant 2 : i32
    %c2_i32_178 = arith.constant 2 : i32
    %c7_i32_179 = arith.constant 7 : i32
    %c0_i32_180 = arith.constant 0 : i32
    %190 = tpu.memref_slice %arg2[%189, %c0_i32_180] : memref<64x256xf32, #tpu.memory_space<any>> -> memref<1x256xf32, #tpu.memory_space<any>>
    %c7_i32_181 = arith.constant 7 : i32
    %c0_i32_182 = arith.constant 0 : i32
    %191 = tpu.memref_slice %arg7[%c2_i32_177, %c7_i32_181, %c0_i32_182] : memref<4x8x256xf32, #tpu.memory_space<vmem>> -> memref<1x1x256xf32, #tpu.memory_space<vmem>>
    %192 = tpu.memref_squeeze %191 : memref<1x1x256xf32, #tpu.memory_space<vmem>> -> memref<1x256xf32, #tpu.memory_space<vmem>>
    %193 = tpu.memref_slice %arg8[%c2_i32_178, %c7_i32_179] : memref<4x8x!tpu.dma_semaphore, #tpu.memory_space<semaphore_mem>> -> memref<1x1x!tpu.dma_semaphore, #tpu.memory_space<semaphore_mem>>
    %194 = tpu.memref_squeeze %193 : memref<1x1x!tpu.dma_semaphore, #tpu.memory_space<semaphore_mem>> -> memref<!tpu.dma_semaphore, #tpu.memory_space<semaphore_mem>>
    tpu.enqueue_dma source(%190 : memref<1x256xf32, #tpu.memory_space<any>>) target(%192 : memref<1x256xf32, #tpu.memory_space<vmem>>) target_semaphore(%194 : memref<!tpu.dma_semaphore, #tpu.memory_space<semaphore_mem>>)
    %c0_i32_183 = arith.constant 0 : i32
    %c8_i32_184 = arith.constant 8 : i32
    %195 = arith.addi %c0_i32_183, %c8_i32_184 : i32
    %c1_i32_185 = arith.constant 1 : i32
    scf.for %arg9 = %c0_i32_183 to %195 step %c1_i32_185  : i32 {
      %c1_i32_197 = arith.constant 1 : i32
      %205 = arith.muli %arg9, %c1_i32_197 : i32
      %c0_i32_198 = arith.constant 0 : i32
      %206 = arith.addi %c0_i32_198, %205 : i32
      %c4_i32_199 = arith.constant 4 : i32
      %c0_i32_200 = arith.constant 0 : i32
      %207 = arith.cmpi eq, %c4_i32_199, %c0_i32_200 : i32
      %c1_i32_201 = arith.constant 1 : i32
      %208 = arith.select %207, %c1_i32_201, %c4_i32_199 : i32
      %209 = arith.remsi %206, %208 : i32
      %c0_i32_202 = arith.constant 0 : i32
      %210 = arith.cmpi ne, %209, %c0_i32_202 : i32
      %c0_i32_203 = arith.constant 0 : i32
      %211 = arith.cmpi slt, %209, %c0_i32_203 : i32
      %c0_i32_204 = arith.constant 0 : i32
      %212 = arith.cmpi slt, %208, %c0_i32_204 : i32
      %213 = arith.xori %211, %212 : i1
      %214 = arith.andi %213, %210 : i1
      %215 = arith.addi %209, %208 : i32
      %216 = arith.select %214, %215, %209 : i32
      %c0_i32_205 = arith.constant 0 : i32
      %c0_i32_206 = arith.constant 0 : i32
      %c0_i32_207 = arith.constant 0 : i32
      %217 = tpu.memref_slice %arg2[%c0_i32_206, %c0_i32_207] : memref<64x256xf32, #tpu.memory_space<any>> -> memref<1x256xf32, #tpu.memory_space<any>>
      %c0_i32_208 = arith.constant 0 : i32
      %c0_i32_209 = arith.constant 0 : i32
      %218 = tpu.memref_slice %arg7[%216, %c0_i32_208, %c0_i32_209] : memref<4x8x256xf32, #tpu.memory_space<vmem>> -> memref<1x1x256xf32, #tpu.memory_space<vmem>>
      %219 = tpu.memref_squeeze %218 : memref<1x1x256xf32, #tpu.memory_space<vmem>> -> memref<1x256xf32, #tpu.memory_space<vmem>>
      %220 = tpu.memref_slice %arg8[%216, %c0_i32_205] : memref<4x8x!tpu.dma_semaphore, #tpu.memory_space<semaphore_mem>> -> memref<1x1x!tpu.dma_semaphore, #tpu.memory_space<semaphore_mem>>
      %221 = tpu.memref_squeeze %220 : memref<1x1x!tpu.dma_semaphore, #tpu.memory_space<semaphore_mem>> -> memref<!tpu.dma_semaphore, #tpu.memory_space<semaphore_mem>>
      tpu.wait_dma2 semaphore(%221 : memref<!tpu.dma_semaphore, #tpu.memory_space<semaphore_mem>>) src(%217 : memref<1x256xf32, #tpu.memory_space<any>>) dst(%219 : memref<1x256xf32, #tpu.memory_space<vmem>>)
      %c1_i32_210 = arith.constant 1 : i32
      %c0_i32_211 = arith.constant 0 : i32
      %c0_i32_212 = arith.constant 0 : i32
      %222 = tpu.memref_slice %arg2[%c0_i32_211, %c0_i32_212] : memref<64x256xf32, #tpu.memory_space<any>> -> memref<1x256xf32, #tpu.memory_space<any>>
      %c1_i32_213 = arith.constant 1 : i32
      %c0_i32_214 = arith.constant 0 : i32
      %223 = tpu.memref_slice %arg7[%216, %c1_i32_213, %c0_i32_214] : memref<4x8x256xf32, #tpu.memory_space<vmem>> -> memref<1x1x256xf32, #tpu.memory_space<vmem>>
      %224 = tpu.memref_squeeze %223 : memref<1x1x256xf32, #tpu.memory_space<vmem>> -> memref<1x256xf32, #tpu.memory_space<vmem>>
      %225 = tpu.memref_slice %arg8[%216, %c1_i32_210] : memref<4x8x!tpu.dma_semaphore, #tpu.memory_space<semaphore_mem>> -> memref<1x1x!tpu.dma_semaphore, #tpu.memory_space<semaphore_mem>>
      %226 = tpu.memref_squeeze %225 : memref<1x1x!tpu.dma_semaphore, #tpu.memory_space<semaphore_mem>> -> memref<!tpu.dma_semaphore, #tpu.memory_space<semaphore_mem>>
      tpu.wait_dma2 semaphore(%226 : memref<!tpu.dma_semaphore, #tpu.memory_space<semaphore_mem>>) src(%222 : memref<1x256xf32, #tpu.memory_space<any>>) dst(%224 : memref<1x256xf32, #tpu.memory_space<vmem>>)
      %c2_i32_215 = arith.constant 2 : i32
      %c0_i32_216 = arith.constant 0 : i32
      %c0_i32_217 = arith.constant 0 : i32
      %227 = tpu.memref_slice %arg2[%c0_i32_216, %c0_i32_217] : memref<64x256xf32, #tpu.memory_space<any>> -> memref<1x256xf32, #tpu.memory_space<any>>
      %c2_i32_218 = arith.constant 2 : i32
      %c0_i32_219 = arith.constant 0 : i32
      %228 = tpu.memref_slice %arg7[%216, %c2_i32_218, %c0_i32_219] : memref<4x8x256xf32, #tpu.memory_space<vmem>> -> memref<1x1x256xf32, #tpu.memory_space<vmem>>
      %229 = tpu.memref_squeeze %228 : memref<1x1x256xf32, #tpu.memory_space<vmem>> -> memref<1x256xf32, #tpu.memory_space<vmem>>
      %230 = tpu.memref_slice %arg8[%216, %c2_i32_215] : memref<4x8x!tpu.dma_semaphore, #tpu.memory_space<semaphore_mem>> -> memref<1x1x!tpu.dma_semaphore, #tpu.memory_space<semaphore_mem>>
      %231 = tpu.memref_squeeze %230 : memref<1x1x!tpu.dma_semaphore, #tpu.memory_space<semaphore_mem>> -> memref<!tpu.dma_semaphore, #tpu.memory_space<semaphore_mem>>
      tpu.wait_dma2 semaphore(%231 : memref<!tpu.dma_semaphore, #tpu.memory_space<semaphore_mem>>) src(%227 : memref<1x256xf32, #tpu.memory_space<any>>) dst(%229 : memref<1x256xf32, #tpu.memory_space<vmem>>)
      %c3_i32_220 = arith.constant 3 : i32
      %c0_i32_221 = arith.constant 0 : i32
      %c0_i32_222 = arith.constant 0 : i32
      %232 = tpu.memref_slice %arg2[%c0_i32_221, %c0_i32_222] : memref<64x256xf32, #tpu.memory_space<any>> -> memref<1x256xf32, #tpu.memory_space<any>>
      %c3_i32_223 = arith.constant 3 : i32
      %c0_i32_224 = arith.constant 0 : i32
      %233 = tpu.memref_slice %arg7[%216, %c3_i32_223, %c0_i32_224] : memref<4x8x256xf32, #tpu.memory_space<vmem>> -> memref<1x1x256xf32, #tpu.memory_space<vmem>>
      %234 = tpu.memref_squeeze %233 : memref<1x1x256xf32, #tpu.memory_space<vmem>> -> memref<1x256xf32, #tpu.memory_space<vmem>>
      %235 = tpu.memref_slice %arg8[%216, %c3_i32_220] : memref<4x8x!tpu.dma_semaphore, #tpu.memory_space<semaphore_mem>> -> memref<1x1x!tpu.dma_semaphore, #tpu.memory_space<semaphore_mem>>
      %236 = tpu.memref_squeeze %235 : memref<1x1x!tpu.dma_semaphore, #tpu.memory_space<semaphore_mem>> -> memref<!tpu.dma_semaphore, #tpu.memory_space<semaphore_mem>>
      tpu.wait_dma2 semaphore(%236 : memref<!tpu.dma_semaphore, #tpu.memory_space<semaphore_mem>>) src(%232 : memref<1x256xf32, #tpu.memory_space<any>>) dst(%234 : memref<1x256xf32, #tpu.memory_space<vmem>>)
      %c4_i32_225 = arith.constant 4 : i32
      %c0_i32_226 = arith.constant 0 : i32
      %c0_i32_227 = arith.constant 0 : i32
      %237 = tpu.memref_slice %arg2[%c0_i32_226, %c0_i32_227] : memref<64x256xf32, #tpu.memory_space<any>> -> memref<1x256xf32, #tpu.memory_space<any>>
      %c4_i32_228 = arith.constant 4 : i32
      %c0_i32_229 = arith.constant 0 : i32
      %238 = tpu.memref_slice %arg7[%216, %c4_i32_228, %c0_i32_229] : memref<4x8x256xf32, #tpu.memory_space<vmem>> -> memref<1x1x256xf32, #tpu.memory_space<vmem>>
      %239 = tpu.memref_squeeze %238 : memref<1x1x256xf32, #tpu.memory_space<vmem>> -> memref<1x256xf32, #tpu.memory_space<vmem>>
      %240 = tpu.memref_slice %arg8[%216, %c4_i32_225] : memref<4x8x!tpu.dma_semaphore, #tpu.memory_space<semaphore_mem>> -> memref<1x1x!tpu.dma_semaphore, #tpu.memory_space<semaphore_mem>>
      %241 = tpu.memref_squeeze %240 : memref<1x1x!tpu.dma_semaphore, #tpu.memory_space<semaphore_mem>> -> memref<!tpu.dma_semaphore, #tpu.memory_space<semaphore_mem>>
      tpu.wait_dma2 semaphore(%241 : memref<!tpu.dma_semaphore, #tpu.memory_space<semaphore_mem>>) src(%237 : memref<1x256xf32, #tpu.memory_space<any>>) dst(%239 : memref<1x256xf32, #tpu.memory_space<vmem>>)
      %c5_i32_230 = arith.constant 5 : i32
      %c0_i32_231 = arith.constant 0 : i32
      %c0_i32_232 = arith.constant 0 : i32
      %242 = tpu.memref_slice %arg2[%c0_i32_231, %c0_i32_232] : memref<64x256xf32, #tpu.memory_space<any>> -> memref<1x256xf32, #tpu.memory_space<any>>
      %c5_i32_233 = arith.constant 5 : i32
      %c0_i32_234 = arith.constant 0 : i32
      %243 = tpu.memref_slice %arg7[%216, %c5_i32_233, %c0_i32_234] : memref<4x8x256xf32, #tpu.memory_space<vmem>> -> memref<1x1x256xf32, #tpu.memory_space<vmem>>
      %244 = tpu.memref_squeeze %243 : memref<1x1x256xf32, #tpu.memory_space<vmem>> -> memref<1x256xf32, #tpu.memory_space<vmem>>
      %245 = tpu.memref_slice %arg8[%216, %c5_i32_230] : memref<4x8x!tpu.dma_semaphore, #tpu.memory_space<semaphore_mem>> -> memref<1x1x!tpu.dma_semaphore, #tpu.memory_space<semaphore_mem>>
      %246 = tpu.memref_squeeze %245 : memref<1x1x!tpu.dma_semaphore, #tpu.memory_space<semaphore_mem>> -> memref<!tpu.dma_semaphore, #tpu.memory_space<semaphore_mem>>
      tpu.wait_dma2 semaphore(%246 : memref<!tpu.dma_semaphore, #tpu.memory_space<semaphore_mem>>) src(%242 : memref<1x256xf32, #tpu.memory_space<any>>) dst(%244 : memref<1x256xf32, #tpu.memory_space<vmem>>)
      %c6_i32_235 = arith.constant 6 : i32
      %c0_i32_236 = arith.constant 0 : i32
      %c0_i32_237 = arith.constant 0 : i32
      %247 = tpu.memref_slice %arg2[%c0_i32_236, %c0_i32_237] : memref<64x256xf32, #tpu.memory_space<any>> -> memref<1x256xf32, #tpu.memory_space<any>>
      %c6_i32_238 = arith.constant 6 : i32
      %c0_i32_239 = arith.constant 0 : i32
      %248 = tpu.memref_slice %arg7[%216, %c6_i32_238, %c0_i32_239] : memref<4x8x256xf32, #tpu.memory_space<vmem>> -> memref<1x1x256xf32, #tpu.memory_space<vmem>>
      %249 = tpu.memref_squeeze %248 : memref<1x1x256xf32, #tpu.memory_space<vmem>> -> memref<1x256xf32, #tpu.memory_space<vmem>>
      %250 = tpu.memref_slice %arg8[%216, %c6_i32_235] : memref<4x8x!tpu.dma_semaphore, #tpu.memory_space<semaphore_mem>> -> memref<1x1x!tpu.dma_semaphore, #tpu.memory_space<semaphore_mem>>
      %251 = tpu.memref_squeeze %250 : memref<1x1x!tpu.dma_semaphore, #tpu.memory_space<semaphore_mem>> -> memref<!tpu.dma_semaphore, #tpu.memory_space<semaphore_mem>>
      tpu.wait_dma2 semaphore(%251 : memref<!tpu.dma_semaphore, #tpu.memory_space<semaphore_mem>>) src(%247 : memref<1x256xf32, #tpu.memory_space<any>>) dst(%249 : memref<1x256xf32, #tpu.memory_space<vmem>>)
      %c7_i32_240 = arith.constant 7 : i32
      %c0_i32_241 = arith.constant 0 : i32
      %c0_i32_242 = arith.constant 0 : i32
      %252 = tpu.memref_slice %arg2[%c0_i32_241, %c0_i32_242] : memref<64x256xf32, #tpu.memory_space<any>> -> memref<1x256xf32, #tpu.memory_space<any>>
      %c7_i32_243 = arith.constant 7 : i32
      %c0_i32_244 = arith.constant 0 : i32
      %253 = tpu.memref_slice %arg7[%216, %c7_i32_243, %c0_i32_244] : memref<4x8x256xf32, #tpu.memory_space<vmem>> -> memref<1x1x256xf32, #tpu.memory_space<vmem>>
      %254 = tpu.memref_squeeze %253 : memref<1x1x256xf32, #tpu.memory_space<vmem>> -> memref<1x256xf32, #tpu.memory_space<vmem>>
      %255 = tpu.memref_slice %arg8[%216, %c7_i32_240] : memref<4x8x!tpu.dma_semaphore, #tpu.memory_space<semaphore_mem>> -> memref<1x1x!tpu.dma_semaphore, #tpu.memory_space<semaphore_mem>>
      %256 = tpu.memref_squeeze %255 : memref<1x1x!tpu.dma_semaphore, #tpu.memory_space<semaphore_mem>> -> memref<!tpu.dma_semaphore, #tpu.memory_space<semaphore_mem>>
      tpu.wait_dma2 semaphore(%256 : memref<!tpu.dma_semaphore, #tpu.memory_space<semaphore_mem>>) src(%252 : memref<1x256xf32, #tpu.memory_space<any>>) dst(%254 : memref<1x256xf32, #tpu.memory_space<vmem>>)
      %c3_i32_245 = arith.constant 3 : i32
      %257 = arith.addi %206, %c3_i32_245 : i32
      %c8_i32_246 = arith.constant 8 : i32
      %258 = arith.cmpi slt, %257, %c8_i32_246 : i32
      %259 = arith.extui %258 : i1 to i32
      %c0_i32_247 = arith.constant 0 : i32
      %260 = arith.cmpi ne, %259, %c0_i32_247 : i32
      scf.if %260 {
        %c3_i32_254 = arith.constant 3 : i32
        %267 = arith.addi %206, %c3_i32_254 : i32
        %c3_i32_255 = arith.constant 3 : i32
        %268 = arith.addi %206, %c3_i32_255 : i32
        %c4_i32_256 = arith.constant 4 : i32
        %c0_i32_257 = arith.constant 0 : i32
        %269 = arith.cmpi eq, %c4_i32_256, %c0_i32_257 : i32
        %c1_i32_258 = arith.constant 1 : i32
        %270 = arith.select %269, %c1_i32_258, %c4_i32_256 : i32
        %271 = arith.remsi %268, %270 : i32
        %c0_i32_259 = arith.constant 0 : i32
        %272 = arith.cmpi ne, %271, %c0_i32_259 : i32
        %c0_i32_260 = arith.constant 0 : i32
        %273 = arith.cmpi slt, %271, %c0_i32_260 : i32
        %c0_i32_261 = arith.constant 0 : i32
        %274 = arith.cmpi slt, %270, %c0_i32_261 : i32
        %275 = arith.xori %273, %274 : i1
        %276 = arith.andi %275, %272 : i1
        %277 = arith.addi %271, %270 : i32
        %278 = arith.select %276, %277, %271 : i32
        %c0_i32_262 = arith.constant 0 : i32
        %279 = arith.addi %0, %c0_i32_262 : i32
        %280 = arith.index_cast %279 : i32 to index
        %281 = arith.index_cast %267 : i32 to index
        %282 = memref.load %arg1[%280, %281] : memref<8x8xi32, #tpu.memory_space<smem>>
        %c0_i32_263 = arith.constant 0 : i32
        %c0_i32_264 = arith.constant 0 : i32
        %283 = tpu.memref_slice %arg2[%282, %c0_i32_264] : memref<64x256xf32, #tpu.memory_space<any>> -> memref<1x256xf32, #tpu.memory_space<any>>
        %c0_i32_265 = arith.constant 0 : i32
        %c0_i32_266 = arith.constant 0 : i32
        %284 = tpu.memref_slice %arg7[%278, %c0_i32_265, %c0_i32_266] : memref<4x8x256xf32, #tpu.memory_space<vmem>> -> memref<1x1x256xf32, #tpu.memory_space<vmem>>
        %285 = tpu.memref_squeeze %284 : memref<1x1x256xf32, #tpu.memory_space<vmem>> -> memref<1x256xf32, #tpu.memory_space<vmem>>
        %286 = tpu.memref_slice %arg8[%278, %c0_i32_263] : memref<4x8x!tpu.dma_semaphore, #tpu.memory_space<semaphore_mem>> -> memref<1x1x!tpu.dma_semaphore, #tpu.memory_space<semaphore_mem>>
        %287 = tpu.memref_squeeze %286 : memref<1x1x!tpu.dma_semaphore, #tpu.memory_space<semaphore_mem>> -> memref<!tpu.dma_semaphore, #tpu.memory_space<semaphore_mem>>
        tpu.enqueue_dma source(%283 : memref<1x256xf32, #tpu.memory_space<any>>) target(%285 : memref<1x256xf32, #tpu.memory_space<vmem>>) target_semaphore(%287 : memref<!tpu.dma_semaphore, #tpu.memory_space<semaphore_mem>>)
        %c1_i32_267 = arith.constant 1 : i32
        %288 = arith.addi %0, %c1_i32_267 : i32
        %289 = arith.index_cast %288 : i32 to index
        %290 = arith.index_cast %267 : i32 to index
        %291 = memref.load %arg1[%289, %290] : memref<8x8xi32, #tpu.memory_space<smem>>
        %c1_i32_268 = arith.constant 1 : i32
        %c0_i32_269 = arith.constant 0 : i32
        %292 = tpu.memref_slice %arg2[%291, %c0_i32_269] : memref<64x256xf32, #tpu.memory_space<any>> -> memref<1x256xf32, #tpu.memory_space<any>>
        %c1_i32_270 = arith.constant 1 : i32
        %c0_i32_271 = arith.constant 0 : i32
        %293 = tpu.memref_slice %arg7[%278, %c1_i32_270, %c0_i32_271] : memref<4x8x256xf32, #tpu.memory_space<vmem>> -> memref<1x1x256xf32, #tpu.memory_space<vmem>>
        %294 = tpu.memref_squeeze %293 : memref<1x1x256xf32, #tpu.memory_space<vmem>> -> memref<1x256xf32, #tpu.memory_space<vmem>>
        %295 = tpu.memref_slice %arg8[%278, %c1_i32_268] : memref<4x8x!tpu.dma_semaphore, #tpu.memory_space<semaphore_mem>> -> memref<1x1x!tpu.dma_semaphore, #tpu.memory_space<semaphore_mem>>
        %296 = tpu.memref_squeeze %295 : memref<1x1x!tpu.dma_semaphore, #tpu.memory_space<semaphore_mem>> -> memref<!tpu.dma_semaphore, #tpu.memory_space<semaphore_mem>>
        tpu.enqueue_dma source(%292 : memref<1x256xf32, #tpu.memory_space<any>>) target(%294 : memref<1x256xf32, #tpu.memory_space<vmem>>) target_semaphore(%296 : memref<!tpu.dma_semaphore, #tpu.memory_space<semaphore_mem>>)
        %c2_i32_272 = arith.constant 2 : i32
        %297 = arith.addi %0, %c2_i32_272 : i32
        %298 = arith.index_cast %297 : i32 to index
        %299 = arith.index_cast %267 : i32 to index
        %300 = memref.load %arg1[%298, %299] : memref<8x8xi32, #tpu.memory_space<smem>>
        %c2_i32_273 = arith.constant 2 : i32
        %c0_i32_274 = arith.constant 0 : i32
        %301 = tpu.memref_slice %arg2[%300, %c0_i32_274] : memref<64x256xf32, #tpu.memory_space<any>> -> memref<1x256xf32, #tpu.memory_space<any>>
        %c2_i32_275 = arith.constant 2 : i32
        %c0_i32_276 = arith.constant 0 : i32
        %302 = tpu.memref_slice %arg7[%278, %c2_i32_275, %c0_i32_276] : memref<4x8x256xf32, #tpu.memory_space<vmem>> -> memref<1x1x256xf32, #tpu.memory_space<vmem>>
        %303 = tpu.memref_squeeze %302 : memref<1x1x256xf32, #tpu.memory_space<vmem>> -> memref<1x256xf32, #tpu.memory_space<vmem>>
        %304 = tpu.memref_slice %arg8[%278, %c2_i32_273] : memref<4x8x!tpu.dma_semaphore, #tpu.memory_space<semaphore_mem>> -> memref<1x1x!tpu.dma_semaphore, #tpu.memory_space<semaphore_mem>>
        %305 = tpu.memref_squeeze %304 : memref<1x1x!tpu.dma_semaphore, #tpu.memory_space<semaphore_mem>> -> memref<!tpu.dma_semaphore, #tpu.memory_space<semaphore_mem>>
        tpu.enqueue_dma source(%301 : memref<1x256xf32, #tpu.memory_space<any>>) target(%303 : memref<1x256xf32, #tpu.memory_space<vmem>>) target_semaphore(%305 : memref<!tpu.dma_semaphore, #tpu.memory_space<semaphore_mem>>)
        %c3_i32_277 = arith.constant 3 : i32
        %306 = arith.addi %0, %c3_i32_277 : i32
        %307 = arith.index_cast %306 : i32 to index
        %308 = arith.index_cast %267 : i32 to index
        %309 = memref.load %arg1[%307, %308] : memref<8x8xi32, #tpu.memory_space<smem>>
        %c3_i32_278 = arith.constant 3 : i32
        %c0_i32_279 = arith.constant 0 : i32
        %310 = tpu.memref_slice %arg2[%309, %c0_i32_279] : memref<64x256xf32, #tpu.memory_space<any>> -> memref<1x256xf32, #tpu.memory_space<any>>
        %c3_i32_280 = arith.constant 3 : i32
        %c0_i32_281 = arith.constant 0 : i32
        %311 = tpu.memref_slice %arg7[%278, %c3_i32_280, %c0_i32_281] : memref<4x8x256xf32, #tpu.memory_space<vmem>> -> memref<1x1x256xf32, #tpu.memory_space<vmem>>
        %312 = tpu.memref_squeeze %311 : memref<1x1x256xf32, #tpu.memory_space<vmem>> -> memref<1x256xf32, #tpu.memory_space<vmem>>
        %313 = tpu.memref_slice %arg8[%278, %c3_i32_278] : memref<4x8x!tpu.dma_semaphore, #tpu.memory_space<semaphore_mem>> -> memref<1x1x!tpu.dma_semaphore, #tpu.memory_space<semaphore_mem>>
        %314 = tpu.memref_squeeze %313 : memref<1x1x!tpu.dma_semaphore, #tpu.memory_space<semaphore_mem>> -> memref<!tpu.dma_semaphore, #tpu.memory_space<semaphore_mem>>
        tpu.enqueue_dma source(%310 : memref<1x256xf32, #tpu.memory_space<any>>) target(%312 : memref<1x256xf32, #tpu.memory_space<vmem>>) target_semaphore(%314 : memref<!tpu.dma_semaphore, #tpu.memory_space<semaphore_mem>>)
        %c4_i32_282 = arith.constant 4 : i32
        %315 = arith.addi %0, %c4_i32_282 : i32
        %316 = arith.index_cast %315 : i32 to index
        %317 = arith.index_cast %267 : i32 to index
        %318 = memref.load %arg1[%316, %317] : memref<8x8xi32, #tpu.memory_space<smem>>
        %c4_i32_283 = arith.constant 4 : i32
        %c0_i32_284 = arith.constant 0 : i32
        %319 = tpu.memref_slice %arg2[%318, %c0_i32_284] : memref<64x256xf32, #tpu.memory_space<any>> -> memref<1x256xf32, #tpu.memory_space<any>>
        %c4_i32_285 = arith.constant 4 : i32
        %c0_i32_286 = arith.constant 0 : i32
        %320 = tpu.memref_slice %arg7[%278, %c4_i32_285, %c0_i32_286] : memref<4x8x256xf32, #tpu.memory_space<vmem>> -> memref<1x1x256xf32, #tpu.memory_space<vmem>>
        %321 = tpu.memref_squeeze %320 : memref<1x1x256xf32, #tpu.memory_space<vmem>> -> memref<1x256xf32, #tpu.memory_space<vmem>>
        %322 = tpu.memref_slice %arg8[%278, %c4_i32_283] : memref<4x8x!tpu.dma_semaphore, #tpu.memory_space<semaphore_mem>> -> memref<1x1x!tpu.dma_semaphore, #tpu.memory_space<semaphore_mem>>
        %323 = tpu.memref_squeeze %322 : memref<1x1x!tpu.dma_semaphore, #tpu.memory_space<semaphore_mem>> -> memref<!tpu.dma_semaphore, #tpu.memory_space<semaphore_mem>>
        tpu.enqueue_dma source(%319 : memref<1x256xf32, #tpu.memory_space<any>>) target(%321 : memref<1x256xf32, #tpu.memory_space<vmem>>) target_semaphore(%323 : memref<!tpu.dma_semaphore, #tpu.memory_space<semaphore_mem>>)
        %c5_i32_287 = arith.constant 5 : i32
        %324 = arith.addi %0, %c5_i32_287 : i32
        %325 = arith.index_cast %324 : i32 to index
        %326 = arith.index_cast %267 : i32 to index
        %327 = memref.load %arg1[%325, %326] : memref<8x8xi32, #tpu.memory_space<smem>>
        %c5_i32_288 = arith.constant 5 : i32
        %c0_i32_289 = arith.constant 0 : i32
        %328 = tpu.memref_slice %arg2[%327, %c0_i32_289] : memref<64x256xf32, #tpu.memory_space<any>> -> memref<1x256xf32, #tpu.memory_space<any>>
        %c5_i32_290 = arith.constant 5 : i32
        %c0_i32_291 = arith.constant 0 : i32
        %329 = tpu.memref_slice %arg7[%278, %c5_i32_290, %c0_i32_291] : memref<4x8x256xf32, #tpu.memory_space<vmem>> -> memref<1x1x256xf32, #tpu.memory_space<vmem>>
        %330 = tpu.memref_squeeze %329 : memref<1x1x256xf32, #tpu.memory_space<vmem>> -> memref<1x256xf32, #tpu.memory_space<vmem>>
        %331 = tpu.memref_slice %arg8[%278, %c5_i32_288] : memref<4x8x!tpu.dma_semaphore, #tpu.memory_space<semaphore_mem>> -> memref<1x1x!tpu.dma_semaphore, #tpu.memory_space<semaphore_mem>>
        %332 = tpu.memref_squeeze %331 : memref<1x1x!tpu.dma_semaphore, #tpu.memory_space<semaphore_mem>> -> memref<!tpu.dma_semaphore, #tpu.memory_space<semaphore_mem>>
        tpu.enqueue_dma source(%328 : memref<1x256xf32, #tpu.memory_space<any>>) target(%330 : memref<1x256xf32, #tpu.memory_space<vmem>>) target_semaphore(%332 : memref<!tpu.dma_semaphore, #tpu.memory_space<semaphore_mem>>)
        %c6_i32_292 = arith.constant 6 : i32
        %333 = arith.addi %0, %c6_i32_292 : i32
        %334 = arith.index_cast %333 : i32 to index
        %335 = arith.index_cast %267 : i32 to index
        %336 = memref.load %arg1[%334, %335] : memref<8x8xi32, #tpu.memory_space<smem>>
        %c6_i32_293 = arith.constant 6 : i32
        %c0_i32_294 = arith.constant 0 : i32
        %337 = tpu.memref_slice %arg2[%336, %c0_i32_294] : memref<64x256xf32, #tpu.memory_space<any>> -> memref<1x256xf32, #tpu.memory_space<any>>
        %c6_i32_295 = arith.constant 6 : i32
        %c0_i32_296 = arith.constant 0 : i32
        %338 = tpu.memref_slice %arg7[%278, %c6_i32_295, %c0_i32_296] : memref<4x8x256xf32, #tpu.memory_space<vmem>> -> memref<1x1x256xf32, #tpu.memory_space<vmem>>
        %339 = tpu.memref_squeeze %338 : memref<1x1x256xf32, #tpu.memory_space<vmem>> -> memref<1x256xf32, #tpu.memory_space<vmem>>
        %340 = tpu.memref_slice %arg8[%278, %c6_i32_293] : memref<4x8x!tpu.dma_semaphore, #tpu.memory_space<semaphore_mem>> -> memref<1x1x!tpu.dma_semaphore, #tpu.memory_space<semaphore_mem>>
        %341 = tpu.memref_squeeze %340 : memref<1x1x!tpu.dma_semaphore, #tpu.memory_space<semaphore_mem>> -> memref<!tpu.dma_semaphore, #tpu.memory_space<semaphore_mem>>
        tpu.enqueue_dma source(%337 : memref<1x256xf32, #tpu.memory_space<any>>) target(%339 : memref<1x256xf32, #tpu.memory_space<vmem>>) target_semaphore(%341 : memref<!tpu.dma_semaphore, #tpu.memory_space<semaphore_mem>>)
        %c7_i32_297 = arith.constant 7 : i32
        %342 = arith.addi %0, %c7_i32_297 : i32
        %343 = arith.index_cast %342 : i32 to index
        %344 = arith.index_cast %267 : i32 to index
        %345 = memref.load %arg1[%343, %344] : memref<8x8xi32, #tpu.memory_space<smem>>
        %c7_i32_298 = arith.constant 7 : i32
        %c0_i32_299 = arith.constant 0 : i32
        %346 = tpu.memref_slice %arg2[%345, %c0_i32_299] : memref<64x256xf32, #tpu.memory_space<any>> -> memref<1x256xf32, #tpu.memory_space<any>>
        %c7_i32_300 = arith.constant 7 : i32
        %c0_i32_301 = arith.constant 0 : i32
        %347 = tpu.memref_slice %arg7[%278, %c7_i32_300, %c0_i32_301] : memref<4x8x256xf32, #tpu.memory_space<vmem>> -> memref<1x1x256xf32, #tpu.memory_space<vmem>>
        %348 = tpu.memref_squeeze %347 : memref<1x1x256xf32, #tpu.memory_space<vmem>> -> memref<1x256xf32, #tpu.memory_space<vmem>>
        %349 = tpu.memref_slice %arg8[%278, %c7_i32_298] : memref<4x8x!tpu.dma_semaphore, #tpu.memory_space<semaphore_mem>> -> memref<1x1x!tpu.dma_semaphore, #tpu.memory_space<semaphore_mem>>
        %350 = tpu.memref_squeeze %349 : memref<1x1x!tpu.dma_semaphore, #tpu.memory_space<semaphore_mem>> -> memref<!tpu.dma_semaphore, #tpu.memory_space<semaphore_mem>>
        tpu.enqueue_dma source(%346 : memref<1x256xf32, #tpu.memory_space<any>>) target(%348 : memref<1x256xf32, #tpu.memory_space<vmem>>) target_semaphore(%350 : memref<!tpu.dma_semaphore, #tpu.memory_space<semaphore_mem>>)
      } else {
      }
      %c0_248 = arith.constant 0 : index
      %c0_249 = arith.constant 0 : index
      %261 = vector.load %arg6[%c0_248, %c0_249] : memref<8x256xf32, #tpu.memory_space<vmem>>, vector<8x256xf32>
      %262 = arith.index_cast %216 : i32 to index
      %c0_250 = arith.constant 0 : index
      %c0_251 = arith.constant 0 : index
      %263 = vector.load %arg7[%262, %c0_250, %c0_251] : memref<4x8x256xf32, #tpu.memory_space<vmem>>, vector<1x8x256xf32>
      %264 = vector.shape_cast %263 : vector<1x8x256xf32> to vector<8x256xf32>
      %265 = arith.addf %261, %264 : vector<8x256xf32>
      %c0_252 = arith.constant 0 : index
      %c0_253 = arith.constant 0 : index
      %266 = vector.load %arg6[%c0_252, %c0_253] : memref<8x256xf32, #tpu.memory_space<vmem>>, vector<8x256xf32>
      tpu.vector_store %arg6[%c0_252, %c0_253], %265 {strides = array<i32>} : memref<8x256xf32, #tpu.memory_space<vmem>>, vector<8x256xf32>,
    }
    %c8_i32_186 = arith.constant 8 : i32
    %c0_187 = arith.constant 0 : index
    %c0_188 = arith.constant 0 : index
    %196 = vector.load %arg6[%c0_187, %c0_188] : memref<8x256xf32, #tpu.memory_space<vmem>>, vector<8x256xf32>
    %cst_189 = arith.constant 1.250000e-01 : f32
    %197 = vector.broadcast %cst_189 : f32 to vector<8x256xf32>
    %198 = arith.mulf %196, %197 : vector<8x256xf32>
    %c0_190 = arith.constant 0 : index
    %c0_191 = arith.constant 0 : index
    %199 = vector.load %arg3[%c0_190, %c0_191] : memref<256x128xf32, #tpu.memory_space<vmem>>, vector<256x128xf32>
    %cst_192 = arith.constant dense<0.000000e+00> : vector<8x128xf32>
    %200 = tpu.matmul %198, %199, %cst_192 {dimension_numbers = #tpu.dot_dimension_numbers<[1], [0], [0], [1], [0, 0, 1, 1], [], []>} : vector<8x256xf32>, vector<256x128xf32>, vector<8x128xf32> -> vector<8x128xf32>
    %c0_193 = arith.constant 0 : index
    %c0_194 = arith.constant 0 : index
    %201 = vector.load %arg4[%c0_193, %c0_194] : memref<1x128xf32, #tpu.memory_space<vmem>>, vector<1x128xf32>
    %202 = vector.broadcast %201 : vector<1x128xf32> to vector<8x128xf32>
    %203 = arith.addf %200, %202 : vector<8x128xf32>
    %c0_195 = arith.constant 0 : index
    %c0_196 = arith.constant 0 : index
    %204 = vector.load %arg5[%c0_195, %c0_196] : memref<8x128xf32, #tpu.memory_space<vmem>>, vector<8x128xf32>
    tpu.vector_store %arg5[%c0_195, %c0_196], %203 {strides = array<i32>} : memref<8x128xf32, #tpu.memory_space<vmem>>, vector<8x128xf32>,
    return
  }
  func.func @transform_1(%arg0: i32, %arg1: memref<8x8xi32, #tpu.memory_space<smem>>) -> (i32, i32) {
    %c0_i32 = arith.constant 0 : i32
    %c0_i32_0 = arith.constant 0 : i32
    %c0_i32_1 = arith.constant 0 : i32
    return %c0_i32, %c0_i32_0 : i32, i32
  }
  func.func @transform_2(%arg0: i32, %arg1: memref<8x8xi32, #tpu.memory_space<smem>>) -> (i32, i32) {
    %c0_i32 = arith.constant 0 : i32
    %c0_i32_0 = arith.constant 0 : i32
    %c0_i32_1 = arith.constant 0 : i32
    return %c0_i32, %c0_i32_0 : i32, i32
  }
  func.func @transform_3(%arg0: i32, %arg1: memref<8x8xi32, #tpu.memory_space<smem>>) -> (i32, i32) {
    %c0_i32 = arith.constant 0 : i32
    %c0_i32_0 = arith.constant 0 : i32
    return %arg0, %c0_i32 : i32, i32
  }
}

</mosaic_0001>

<llo_original>
// kernel: tpu_custom_call.1
$region0: #{tpu_custom_call.1}
  #allocation0 [shape = 'u32[]', space=smem, size = 0x4, offset = 0x4, fixed_abs, tag = 'smem constant byte address 0x4 - core index']
  #allocation1 [shape = 'u32[144,128]{1,0:T(1,128)}', space=vmem, size = 0x12000, scoped, tag = 'internal scratch']
  #allocation2 [shape = 'f32[8,256]{1,0:T(8,128)}', space=vmem, size = 0x2000, scoped, tag = 'scratch operand']
  #allocation3 [shape = 'f32[4,8,256]{2,1,0:T(8,128)}', space=vmem, size = 0x8000, scoped, tag = 'scratch operand']
  #allocation4 [shape = 's32[32]{0}', space=sflag, size = 0x80, scoped, tag = 'scratch operand']
  #allocation5 [shape = 's32[1]{0}', space=sflag, size = 0x4, scoped, tag = 'scoped memory for tpu_custom_call.1']
  #allocation6 [shape = 'u8[4096]{0}', space=smem, size = 0x1000, scoped, tag = 'prefetched SMEM operand 0']
  #allocation11 [shape = 's32[]', space=sflag, size = 0x4, offset = 0, fixed_abs, tag = 'sflag constant byte address 0x0 - dummy sync flag']
  #allocation12 [shape = 's32[]', space=sflag, size = 0x4, offset = 0, fixed_abs, tag = 'sflag constant byte address 0x0 - dummy sync flag']
  #allocation13 [shape = 's32[]', space=sflag, size = 0x4, offset = 0, fixed_abs, tag = 'sflag constant byte address 0x0 - dummy sync flag']
  #allocation14 [shape = 's32[]', space=sflag, size = 0x4, offset = 0, fixed_abs, tag = 'sflag constant byte address 0x0 - dummy sync flag']
  #allocation15 [shape = 's32[]', space=sflag, size = 0x4, offset = 0, fixed_abs, tag = 'sflag constant byte address 0x0 - dummy sync flag']
  #allocation16 [shape = 's32[]', space=sflag, size = 0x4, offset = 0, fixed_abs, tag = 'sflag constant byte address 0x0 - dummy sync flag']
  #allocation17 [shape = 's32[]', space=sflag, size = 0x4, offset = 0, fixed_abs, tag = 'sflag constant byte address 0x0 - dummy sync flag']
  #allocation18 [shape = 's32[]', space=sflag, size = 0x4, offset = 0, fixed_abs, tag = 'sflag constant byte address 0x0 - dummy sync flag']
  #allocation19 [shape = 's32[]', space=sflag, size = 0x4, offset = 0, fixed_abs, tag = 'sflag constant byte address 0x0 - dummy sync flag']
  #allocation20 [shape = 's32[]', space=sflag, size = 0x4, offset = 0, fixed_abs, tag = 'sflag constant byte address 0x0 - dummy sync flag']
  #allocation21 [shape = 's32[]', space=sflag, size = 0x4, offset = 0, fixed_abs, tag = 'sflag constant byte address 0x0 - dummy sync flag']
  #allocation22 [shape = 's32[]', space=sflag, size = 0x4, offset = 0, fixed_abs, tag = 'sflag constant byte address 0x0 - dummy sync flag']
  #allocation23 [shape = 's32[]', space=sflag, size = 0x4, offset = 0, fixed_abs, tag = 'sflag constant byte address 0x0 - dummy sync flag']
  #allocation24 [shape = 's32[]', space=sflag, size = 0x4, offset = 0, fixed_abs, tag = 'sflag constant byte address 0x0 - dummy sync flag']
  #allocation25 [shape = 's32[]', space=sflag, size = 0x4, offset = 0, fixed_abs, tag = 'sflag constant byte address 0x0 - dummy sync flag']
  #allocation26 [shape = 's32[]', space=sflag, size = 0x4, offset = 0, fixed_abs, tag = 'sflag constant byte address 0x0 - dummy sync flag']
  #allocation27 [shape = 's32[]', space=sflag, size = 0x4, offset = 0, fixed_abs, tag = 'sflag constant byte address 0x0 - dummy sync flag']
  #allocation28 [shape = 's32[]', space=sflag, size = 0x4, offset = 0, fixed_abs, tag = 'sflag constant byte address 0x0 - dummy sync flag']
  #allocation29 [shape = 's32[]', space=sflag, size = 0x4, offset = 0, fixed_abs, tag = 'sflag constant byte address 0x0 - dummy sync flag']
  #allocation30 [shape = 's32[]', space=sflag, size = 0x4, offset = 0, fixed_abs, tag = 'sflag constant byte address 0x0 - dummy sync flag']
  #allocation31 [shape = 's32[]', space=sflag, size = 0x4, offset = 0, fixed_abs, tag = 'sflag constant byte address 0x0 - dummy sync flag']
  #allocation32 [shape = 's32[]', space=sflag, size = 0x4, offset = 0, fixed_abs, tag = 'sflag constant byte address 0x0 - dummy sync flag']
  #allocation33 [shape = 's32[]', space=sflag, size = 0x4, offset = 0, fixed_abs, tag = 'sflag constant byte address 0x0 - dummy sync flag']
  #allocation34 [shape = 's32[]', space=sflag, size = 0x4, offset = 0, fixed_abs, tag = 'sflag constant byte address 0x0 - dummy sync flag']
  #allocation35 [shape = 's32[]', space=sflag, size = 0x4, offset = 0, fixed_abs, tag = 'sflag constant byte address 0x0 - dummy sync flag']
  #allocation36 [shape = 's32[]', space=sflag, size = 0x4, offset = 0, fixed_abs, tag = 'sflag constant byte address 0x0 - dummy sync flag']
  #allocation37 [shape = 's32[]', space=sflag, size = 0x4, offset = 0, fixed_abs, tag = 'sflag constant byte address 0x0 - dummy sync flag']
  #allocation38 [shape = 's32[]', space=sflag, size = 0x4, offset = 0, fixed_abs, tag = 'sflag constant byte address 0x0 - dummy sync flag']
  #allocation39 [shape = 's32[]', space=sflag, size = 0x4, offset = 0, fixed_abs, tag = 'sflag constant byte address 0x0 - dummy sync flag']
  #allocation40 [shape = 's32[]', space=sflag, size = 0x4, offset = 0, fixed_abs, tag = 'sflag constant byte address 0x0 - dummy sync flag']
  #allocation41 [shape = 's32[]', space=sflag, size = 0x4, offset = 0, fixed_abs, tag = 'sflag constant byte address 0x0 - dummy sync flag']
  #allocation42 [shape = 's32[]', space=sflag, size = 0x4, offset = 0, fixed_abs, tag = 'sflag constant byte address 0x0 - dummy sync flag']
  %s0 = inlined_call_operand.hbm [shape: s32[8,8], index: 0, kind: input, shape index: {}]
  %s1 = inlined_call_operand.hbm [shape: f32[64,256], index: 1, kind: input, shape index: {}]
  %s2 = inlined_call_operand.hbm [shape: f32[256,128], index: 2, kind: input, shape index: {}]
  %s3 = inlined_call_operand.vmem [shape: f32[1,128], index: 3, kind: input, shape index: {}]
  %s4 = inlined_call_operand.hbm [shape: f32[8,128], index: 4, kind: output, shape index: {}]
  %s5 = sld [smem:[#allocation0]]
  $region33: #{tpu_custom_call.1} parent=0
    _
  %s7 = ssub.s32 1, %s5
  %s8 = scalar_select 0, %s7, %s5
  %10 = dma.hbm_to_smem %s0, 128, [#allocation6], [#allocation5]
  %11 = dma.done [#allocation5], 128
  %12 = sfence
  $region1: #{tpu_custom_call.1} parent=0
    #allocation7 [shape = 'u8[131072]{0}', space=vmem, size = 0x20000, scoped, tag = 'input window, operand 2, single buffered']
    #allocation8 [shape = 's32[1]{0}', space=sflag, size = 0x4, scoped, tag = 'scoped memory for tpu_custom_call.1']
    #allocation9 [shape = 's32[1]{0}', space=sflag, size = 0x4, scoped, tag = 'scoped memory for tpu_custom_call.1']
    #allocation10 [shape = 'u8[4096]{0}', space=vmem, size = 0x1000, scoped, tag = 'output window, operand 0, single buffered']
    %13 = vsyncpa [#allocation8], 0
    %14 = vsyncpa [#allocation9], 0
    // Predicated region
    $region2: #{tpu_custom_call.1} parent=1 // pred_check
      _
    $region3: #{tpu_custom_call.1} parent=1 // pred_check_branch
      %16 = sbr.rel (0) target = $region5
    $region4: #{tpu_custom_call.1} parent=1 // pred_region
      %s18 = ssub.s32 4096, 4096
      %19 = vsyncadd [#allocation8], %s18
      %s20 = sshll.u32 [#allocation7], 4
      %s21 = int_to_ptr.vmem [resolvable:$true] %s20
      %26 = dma.hbm_to_vmem [thread:$0]  %s2, 4096, %s21, [#allocation8], 128, 128, 8
    $region5: #{tpu_custom_call.1} parent=1 // pred_fallthru
      _
    // Predicated region
    $region6: #{tpu_custom_call.1} parent=1 // pred_check
      _
    $region7: #{tpu_custom_call.1} parent=1 // pred_check_branch
      %28 = sbr.rel (0) target = $region9
    $region8: #{tpu_custom_call.1} parent=1 // pred_region
      _
    $region9: #{tpu_custom_call.1} parent=1 // pred_fallthru
      _
    // Predicated region
    $region10: #{tpu_custom_call.1} parent=1 // pred_check
      _
    $region11: #{tpu_custom_call.1} parent=1 // pred_check_branch
      %30 = sbr.rel (0) target = $region13
    $region12: #{tpu_custom_call.1} parent=1 // pred_region
      %31 = dma.done [#allocation8], 4096
    $region13: #{tpu_custom_call.1} parent=1 // pred_fallthru
      _
    %s32 = smul.u32 0, 8
    %33 = vst [vmem:[#allocation2] sm:$0xff] 0.0
    %34 = vst [vmem:[#allocation2 + $0x8] sm:$0xff] 0.0
    %s35 = smul.u32 %s32, 128
    %s36 = sld [smem:[#allocation6 + %s35]]
    %s37 = sshrl.u32 %s36, 3
    %s38 = sand.u32 %s36, 7
    %s39 = smul.u32 %s37, 16
    %s40 = sadd.s32 %s38, %s39
    %s41 = smul.addr %s40, 16
    %s42 = scalar_lea.hbm %s1, %s41
    %s44 = sshll.u32 [#allocation3], 4
    %s45 = int_to_ptr.vmem [resolvable:$true] %s44
    %47 = dma.hbm_to_vmem [thread:$0]  %s42, 32, %s45, [#allocation4], 128, 128, 1
    %s48 = sadd.s32 %s32, 1
    %s49 = smul.u32 %s48, 128
    %s50 = sld [smem:[#allocation6 + %s49]]
    %s51 = sshrl.u32 %s50, 3
    %s52 = sand.u32 %s50, 7
    %s53 = smul.u32 %s51, 16
    %s54 = sadd.s32 %s52, %s53
    %s55 = smul.addr %s54, 16
    %s56 = scalar_lea.hbm %s1, %s55
    %s57 = scalar_lea.vmem [#allocation3], 1
    %s58 = scalar_lea.sflag [#allocation4], 1
    %s60 = sshll.u32 %s57, 4
    %s61 = int_to_ptr.vmem [resolvable:$true] %s60
    %63 = dma.hbm_to_vmem [thread:$0]  %s56, 32, %s61, %s58, 128, 128, 1
    %s64 = sadd.s32 %s32, 2
    %s65 = smul.u32 %s64, 128
    %s66 = sld [smem:[#allocation6 + %s65]]
    %s67 = sshrl.u32 %s66, 3
    %s68 = sand.u32 %s66, 7
    %s69 = smul.u32 %s67, 16
    %s70 = sadd.s32 %s68, %s69
    %s71 = smul.addr %s70, 16
    %s72 = scalar_lea.hbm %s1, %s71
    %s73 = scalar_lea.vmem [#allocation3], 2
    %s74 = scalar_lea.sflag [#allocation4], 2
    %s76 = sshll.u32 %s73, 4
    %s77 = int_to_ptr.vmem [resolvable:$true] %s76
    %79 = dma.hbm_to_vmem [thread:$0]  %s72, 32, %s77, %s74, 128, 128, 1
    %s80 = sadd.s32 %s32, 3
    %s81 = smul.u32 %s80, 128
    %s82 = sld [smem:[#allocation6 + %s81]]
    %s83 = sshrl.u32 %s82, 3
    %s84 = sand.u32 %s82, 7
    %s85 = smul.u32 %s83, 16
    %s86 = sadd.s32 %s84, %s85
    %s87 = smul.addr %s86, 16
    %s88 = scalar_lea.hbm %s1, %s87
    %s89 = scalar_lea.vmem [#allocation3], 3
    %s90 = scalar_lea.sflag [#allocation4], 3
    %s92 = sshll.u32 %s89, 4
    %s93 = int_to_ptr.vmem [resolvable:$true] %s92
    %95 = dma.hbm_to_vmem [thread:$0]  %s88, 32, %s93, %s90, 128, 128, 1
    %s96 = sadd.s32 %s32, 4
    %s97 = smul.u32 %s96, 128
    %s98 = sld [smem:[#allocation6 + %s97]]
    %s99 = sshrl.u32 %s98, 3
    %s100 = sand.u32 %s98, 7
    %s101 = smul.u32 %s99, 16
    %s102 = sadd.s32 %s100, %s101
    %s103 = smul.addr %s102, 16
    %s104 = scalar_lea.hbm %s1, %s103
    %s105 = scalar_lea.vmem [#allocation3], 4
    %s106 = scalar_lea.sflag [#allocation4], 4
    %s108 = sshll.u32 %s105, 4
    %s109 = int_to_ptr.vmem [resolvable:$true] %s108
    %111 = dma.hbm_to_vmem [thread:$0]  %s104, 32, %s109, %s106, 128, 128, 1
    %s112 = sadd.s32 %s32, 5
    %s113 = smul.u32 %s112, 128
    %s114 = sld [smem:[#allocation6 + %s113]]
    %s115 = sshrl.u32 %s114, 3
    %s116 = sand.u32 %s114, 7
    %s117 = smul.u32 %s115, 16
    %s118 = sadd.s32 %s116, %s117
    %s119 = smul.addr %s118, 16
    %s120 = scalar_lea.hbm %s1, %s119
    %s121 = scalar_lea.vmem [#allocation3], 5
    %s122 = scalar_lea.sflag [#allocation4], 5
    %s124 = sshll.u32 %s121, 4
    %s125 = int_to_ptr.vmem [resolvable:$true] %s124
    %127 = dma.hbm_to_vmem [thread:$0]  %s120, 32, %s125, %s122, 128, 128, 1
    %s128 = sadd.s32 %s32, 6
    %s129 = smul.u32 %s128, 128
    %s130 = sld [smem:[#allocation6 + %s129]]
    %s131 = sshrl.u32 %s130, 3
    %s132 = sand.u32 %s130, 7
    %s133 = smul.u32 %s131, 16
    %s134 = sadd.s32 %s132, %s133
    %s135 = smul.addr %s134, 16
    %s136 = scalar_lea.hbm %s1, %s135
    %s137 = scalar_lea.vmem [#allocation3], 6
    %s138 = scalar_lea.sflag [#allocation4], 6
    %s140 = sshll.u32 %s137, 4
    %s141 = int_to_ptr.vmem [resolvable:$true] %s140
    %143 = dma.hbm_to_vmem [thread:$0]  %s136, 32, %s141, %s138, 128, 128, 1
    %s144 = sadd.s32 %s32, 7
    %s145 = smul.u32 %s144, 128
    %s146 = sld [smem:[#allocation6 + %s145]]
    %s147 = sshrl.u32 %s146, 3
    %s148 = sand.u32 %s146, 7
    %s149 = smul.u32 %s147, 16
    %s150 = sadd.s32 %s148, %s149
    %s151 = smul.addr %s150, 16
    %s152 = scalar_lea.hbm %s1, %s151
    %s153 = scalar_lea.vmem [#allocation3], 7
    %s154 = scalar_lea.sflag [#allocation4], 7
    %s156 = sshll.u32 %s153, 4
    %s157 = int_to_ptr.vmem [resolvable:$true] %s156
    %159 = dma.hbm_to_vmem [thread:$0]  %s152, 32, %s157, %s154, 128, 128, 1
    %s160 = sadd.s32 %s35, 1
    %s161 = sld [smem:[#allocation6 + %s160]]
    %s162 = sshrl.u32 %s161, 3
    %s163 = sand.u32 %s161, 7
    %s164 = smul.u32 %s162, 16
    %s165 = sadd.s32 %s163, %s164
    %s166 = smul.addr %s165, 16
    %s167 = scalar_lea.hbm %s1, %s166
    %s168 = scalar_lea.vmem [#allocation3], 16
    %s169 = scalar_lea.sflag [#allocation4], 8
    %s171 = sshll.u32 %s168, 4
    %s172 = int_to_ptr.vmem [resolvable:$true] %s171
    %174 = dma.hbm_to_vmem [thread:$0]  %s167, 32, %s172, %s169, 128, 128, 1
    %s175 = sadd.s32 %s49, 1
    %s176 = sld [smem:[#allocation6 + %s175]]
    %s177 = sshrl.u32 %s176, 3
    %s178 = sand.u32 %s176, 7
    %s179 = smul.u32 %s177, 16
    %s180 = sadd.s32 %s178, %s179
    %s181 = smul.addr %s180, 16
    %s182 = scalar_lea.hbm %s1, %s181
    %s183 = scalar_lea.vmem [#allocation3], 17
    %s184 = scalar_lea.sflag [#allocation4], 9
    %s186 = sshll.u32 %s183, 4
    %s187 = int_to_ptr.vmem [resolvable:$true] %s186
    %189 = dma.hbm_to_vmem [thread:$0]  %s182, 32, %s187, %s184, 128, 128, 1
    %s190 = sadd.s32 %s65, 1
    %s191 = sld [smem:[#allocation6 + %s190]]
    %s192 = sshrl.u32 %s191, 3
    %s193 = sand.u32 %s191, 7
    %s194 = smul.u32 %s192, 16
    %s195 = sadd.s32 %s193, %s194
    %s196 = smul.addr %s195, 16
    %s197 = scalar_lea.hbm %s1, %s196
    %s198 = scalar_lea.vmem [#allocation3], 18
    %s199 = scalar_lea.sflag [#allocation4], 10
    %s201 = sshll.u32 %s198, 4
    %s202 = int_to_ptr.vmem [resolvable:$true] %s201
    %204 = dma.hbm_to_vmem [thread:$0]  %s197, 32, %s202, %s199, 128, 128, 1
    %s205 = sadd.s32 %s81, 1
    %s206 = sld [smem:[#allocation6 + %s205]]
    %s207 = sshrl.u32 %s206, 3
    %s208 = sand.u32 %s206, 7
    %s209 = smul.u32 %s207, 16
    %s210 = sadd.s32 %s208, %s209
    %s211 = smul.addr %s210, 16
    %s212 = scalar_lea.hbm %s1, %s211
    %s213 = scalar_lea.vmem [#allocation3], 19
    %s214 = scalar_lea.sflag [#allocation4], 11
    %s216 = sshll.u32 %s213, 4
    %s217 = int_to_ptr.vmem [resolvable:$true] %s216
    %219 = dma.hbm_to_vmem [thread:$0]  %s212, 32, %s217, %s214, 128, 128, 1
    %s220 = sadd.s32 %s97, 1
    %s221 = sld [smem:[#allocation6 + %s220]]
    %s222 = sshrl.u32 %s221, 3
    %s223 = sand.u32 %s221, 7
    %s224 = smul.u32 %s222, 16
    %s225 = sadd.s32 %s223, %s224
    %s226 = smul.addr %s225, 16
    %s227 = scalar_lea.hbm %s1, %s226
    %s228 = scalar_lea.vmem [#allocation3], 20
    %s229 = scalar_lea.sflag [#allocation4], 12
    %s231 = sshll.u32 %s228, 4
    %s232 = int_to_ptr.vmem [resolvable:$true] %s231
    %234 = dma.hbm_to_vmem [thread:$0]  %s227, 32, %s232, %s229, 128, 128, 1
    %s235 = sadd.s32 %s113, 1
    %s236 = sld [smem:[#allocation6 + %s235]]
    %s237 = sshrl.u32 %s236, 3
    %s238 = sand.u32 %s236, 7
    %s239 = smul.u32 %s237, 16
    %s240 = sadd.s32 %s238, %s239
    %s241 = smul.addr %s240, 16
    %s242 = scalar_lea.hbm %s1, %s241
    %s243 = scalar_lea.vmem [#allocation3], 21
    %s244 = scalar_lea.sflag [#allocation4], 13
    %s246 = sshll.u32 %s243, 4
    %s247 = int_to_ptr.vmem [resolvable:$true] %s246
    %249 = dma.hbm_to_vmem [thread:$0]  %s242, 32, %s247, %s244, 128, 128, 1
    %s250 = sadd.s32 %s129, 1
    %s251 = sld [smem:[#allocation6 + %s250]]
    %s252 = sshrl.u32 %s251, 3
    %s253 = sand.u32 %s251, 7
    %s254 = smul.u32 %s252, 16
    %s255 = sadd.s32 %s253, %s254
    %s256 = smul.addr %s255, 16
    %s257 = scalar_lea.hbm %s1, %s256
    %s258 = scalar_lea.vmem [#allocation3], 22
    %s259 = scalar_lea.sflag [#allocation4], 14
    %s261 = sshll.u32 %s258, 4
    %s262 = int_to_ptr.vmem [resolvable:$true] %s261
    %264 = dma.hbm_to_vmem [thread:$0]  %s257, 32, %s262, %s259, 128, 128, 1
    %s265 = sadd.s32 %s145, 1
    %s266 = sld [smem:[#allocation6 + %s265]]
    %s267 = sshrl.u32 %s266, 3
    %s268 = sand.u32 %s266, 7
    %s269 = smul.u32 %s267, 16
    %s270 = sadd.s32 %s268, %s269
    %s271 = smul.addr %s270, 16
    %s272 = scalar_lea.hbm %s1, %s271
    %s273 = scalar_lea.vmem [#allocation3], 23
    %s274 = scalar_lea.sflag [#allocation4], 15
    %s276 = sshll.u32 %s273, 4
    %s277 = int_to_ptr.vmem [resolvable:$true] %s276
    %279 = dma.hbm_to_vmem [thread:$0]  %s272, 32, %s277, %s274, 128, 128, 1
    %s280 = sadd.s32 %s35, 2
    %s281 = sld [smem:[#allocation6 + %s280]]
    %s282 = sshrl.u32 %s281, 3
    %s283 = sand.u32 %s281, 7
    %s284 = smul.u32 %s282, 16
    %s285 = sadd.s32 %s283, %s284
    %s286 = smul.addr %s285, 16
    %s287 = scalar_lea.hbm %s1, %s286
    %s288 = scalar_lea.vmem [#allocation3], 32
    %s289 = scalar_lea.sflag [#allocation4], 16
    %s291 = sshll.u32 %s288, 4
    %s292 = int_to_ptr.vmem [resolvable:$true] %s291
    %294 = dma.hbm_to_vmem [thread:$0]  %s287, 32, %s292, %s289, 128, 128, 1
    %s295 = sadd.s32 %s49, 2
    %s296 = sld [smem:[#allocation6 + %s295]]
    %s297 = sshrl.u32 %s296, 3
    %s298 = sand.u32 %s296, 7
    %s299 = smul.u32 %s297, 16
    %s300 = sadd.s32 %s298, %s299
    %s301 = smul.addr %s300, 16
    %s302 = scalar_lea.hbm %s1, %s301
    %s303 = scalar_lea.vmem [#allocation3], 33
    %s304 = scalar_lea.sflag [#allocation4], 17
    %s306 = sshll.u32 %s303, 4
    %s307 = int_to_ptr.vmem [resolvable:$true] %s306
    %309 = dma.hbm_to_vmem [thread:$0]  %s302, 32, %s307, %s304, 128, 128, 1
    %s310 = sadd.s32 %s65, 2
    %s311 = sld [smem:[#allocation6 + %s310]]
    %s312 = sshrl.u32 %s311, 3
    %s313 = sand.u32 %s311, 7
    %s314 = smul.u32 %s312, 16
    %s315 = sadd.s32 %s313, %s314
    %s316 = smul.addr %s315, 16
    %s317 = scalar_lea.hbm %s1, %s316
    %s318 = scalar_lea.vmem [#allocation3], 34
    %s319 = scalar_lea.sflag [#allocation4], 18
    %s321 = sshll.u32 %s318, 4
    %s322 = int_to_ptr.vmem [resolvable:$true] %s321
    %324 = dma.hbm_to_vmem [thread:$0]  %s317, 32, %s322, %s319, 128, 128, 1
    %s325 = sadd.s32 %s81, 2
    %s326 = sld [smem:[#allocation6 + %s325]]
    %s327 = sshrl.u32 %s326, 3
    %s328 = sand.u32 %s326, 7
    %s329 = smul.u32 %s327, 16
    %s330 = sadd.s32 %s328, %s329
    %s331 = smul.addr %s330, 16
    %s332 = scalar_lea.hbm %s1, %s331
    %s333 = scalar_lea.vmem [#allocation3], 35
    %s334 = scalar_lea.sflag [#allocation4], 19
    %s336 = sshll.u32 %s333, 4
    %s337 = int_to_ptr.vmem [resolvable:$true] %s336
    %339 = dma.hbm_to_vmem [thread:$0]  %s332, 32, %s337, %s334, 128, 128, 1
    %s340 = sadd.s32 %s97, 2
    %s341 = sld [smem:[#allocation6 + %s340]]
    %s342 = sshrl.u32 %s341, 3
    %s343 = sand.u32 %s341, 7
    %s344 = smul.u32 %s342, 16
    %s345 = sadd.s32 %s343, %s344
    %s346 = smul.addr %s345, 16
    %s347 = scalar_lea.hbm %s1, %s346
    %s348 = scalar_lea.vmem [#allocation3], 36
    %s349 = scalar_lea.sflag [#allocation4], 20
    %s351 = sshll.u32 %s348, 4
    %s352 = int_to_ptr.vmem [resolvable:$true] %s351
    %354 = dma.hbm_to_vmem [thread:$0]  %s347, 32, %s352, %s349, 128, 128, 1
    %s355 = sadd.s32 %s113, 2
    %s356 = sld [smem:[#allocation6 + %s355]]
    %s357 = sshrl.u32 %s356, 3
    %s358 = sand.u32 %s356, 7
    %s359 = smul.u32 %s357, 16
    %s360 = sadd.s32 %s358, %s359
    %s361 = smul.addr %s360, 16
    %s362 = scalar_lea.hbm %s1, %s361
    %s363 = scalar_lea.vmem [#allocation3], 37
    %s364 = scalar_lea.sflag [#allocation4], 21
    %s366 = sshll.u32 %s363, 4
    %s367 = int_to_ptr.vmem [resolvable:$true] %s366
    %369 = dma.hbm_to_vmem [thread:$0]  %s362, 32, %s367, %s364, 128, 128, 1
    %s370 = sadd.s32 %s129, 2
    %s371 = sld [smem:[#allocation6 + %s370]]
    %s372 = sshrl.u32 %s371, 3
    %s373 = sand.u32 %s371, 7
    %s374 = smul.u32 %s372, 16
    %s375 = sadd.s32 %s373, %s374
    %s376 = smul.addr %s375, 16
    %s377 = scalar_lea.hbm %s1, %s376
    %s378 = scalar_lea.vmem [#allocation3], 38
    %s379 = scalar_lea.sflag [#allocation4], 22
    %s381 = sshll.u32 %s378, 4
    %s382 = int_to_ptr.vmem [resolvable:$true] %s381
    %384 = dma.hbm_to_vmem [thread:$0]  %s377, 32, %s382, %s379, 128, 128, 1
    %s385 = sadd.s32 %s145, 2
    %s386 = sld [smem:[#allocation6 + %s385]]
    %s387 = sshrl.u32 %s386, 3
    %s388 = sand.u32 %s386, 7
    %s389 = smul.u32 %s387, 16
    %s390 = sadd.s32 %s388, %s389
    %s391 = smul.addr %s390, 16
    %s392 = scalar_lea.hbm %s1, %s391
    %s393 = scalar_lea.vmem [#allocation3], 39
    %s394 = scalar_lea.sflag [#allocation4], 23
    %s396 = sshll.u32 %s393, 4
    %s397 = int_to_ptr.vmem [resolvable:$true] %s396
    %399 = dma.hbm_to_vmem [thread:$0]  %s392, 32, %s397, %s394, 128, 128, 1
    loop: start=0, step=1, limit=8
    $region14: #{tpu_custom_call.1} parent=1 // loop_pre_header
      _
    $region15: #{tpu_custom_call.1} parent=1 // loop_header
      %s401 = sphi 0, %s405
      %p402 = scmp.ge.s32.totalorder %s401, 8
    $region16: #{tpu_custom_call.1} parent=1 // loop_header_branch
      %404 = sbr.rel (%p402) target = $region20
    $region17: #{tpu_custom_call.1} parent=1 // loop_body
      %p406 = scmp.lt.s32.totalorder %s401, 0
      %s407 = ssub.s32 0, %s401
      %s408 = scalar_select %p406, %s407, %s401
      %s409 = sand.u32 %s408, 3
      %s410 = ssub.s32 0, %s409
      %s411 = scalar_select %p406, %s410, %s409
      %p412 = scmp.ne.s32.totalorder %s411, 0
      %p413 = scmp.lt.s32.totalorder %s411, 0
      %p414 = pnand %p413, %p412
      %p415 = pneg %p414
      %s416 = sadd.s32 %s411, 4
      %s417 = scalar_select %p415, %s416, %s411
      %s418 = smul.u32 %s417, 8
      %s419 = scalar_lea.sflag [#allocation4], %s418
      %s420 = smul.u32 1, 2
      %s421 = sshll.u32 %s420, 4
      %422 = dma.done %s419, %s421
      %s423 = sadd.s32 1, %s418
      %s424 = scalar_lea.sflag [#allocation4], %s423
      %s425 = sshll.u32 %s420, 4
      %426 = dma.done %s424, %s425
      %s427 = sadd.s32 2, %s418
      %s428 = scalar_lea.sflag [#allocation4], %s427
      %s429 = sshll.u32 %s420, 4
      %430 = dma.done %s428, %s429
      %s431 = sadd.s32 3, %s418
      %s432 = scalar_lea.sflag [#allocation4], %s431
      %s433 = sshll.u32 %s420, 4
      %434 = dma.done %s432, %s433
      %s435 = sadd.s32 4, %s418
      %s436 = scalar_lea.sflag [#allocation4], %s435
      %s437 = sshll.u32 %s420, 4
      %438 = dma.done %s436, %s437
      %s439 = sadd.s32 5, %s418
      %s440 = scalar_lea.sflag [#allocation4], %s439
      %s441 = sshll.u32 %s420, 4
      %442 = dma.done %s440, %s441
      %s443 = sadd.s32 6, %s418
      %s444 = scalar_lea.sflag [#allocation4], %s443
      %s445 = sshll.u32 %s420, 4
      %446 = dma.done %s444, %s445
      %s447 = sadd.s32 7, %s418
      %s448 = scalar_lea.sflag [#allocation4], %s447
      %s449 = sshll.u32 %s420, 4
      %450 = dma.done %s448, %s449
      %s451 = sadd.s32 %s401, 3
      %p452 = scmp.lt.s32.totalorder %s451, 8
      // Predicated region
      $region21: #{tpu_custom_call.1} parent=17 // pred_check
        %p453 = pneg %p452
      $region22: #{tpu_custom_call.1} parent=17 // pred_check_branch
        %455 = sbr.rel (%p453) target = $region24
      $region23: #{tpu_custom_call.1} parent=17 // pred_region
        %p456 = scmp.lt.s32.totalorder %s451, 0
        %s457 = ssub.s32 0, %s451
        %s458 = scalar_select %p456, %s457, %s451
        %s459 = sand.u32 %s458, 3
        %s460 = ssub.s32 0, %s459
        %s461 = scalar_select %p456, %s460, %s459
        %p462 = scmp.ne.s32.totalorder %s461, 0
        %p463 = scmp.lt.s32.totalorder %s461, 0
        %p464 = pnand %p463, %p462
        %p465 = pneg %p464
        %s466 = sadd.s32 %s461, 4
        %s467 = scalar_select %p465, %s466, %s461
        %s468 = sshra.s32 %s451, 7
        %s469 = sand.u32 %s451, 127
        %s470 = sadd.s32 %s468, %s32
        %s471 = smul.u32 %s470, 128
        %s472 = sshra.s32 %s451, 7
        %s473 = sand.u32 %s451, 127
        %s474 = sadd.s32 %s471, %s473
        %s475 = sld [smem:[#allocation6 + %s474]]
        %s476 = sshrl.u32 %s475, 3
        %s477 = sand.u32 %s475, 7
        %s478 = smul.u32 %s476, 16
        %s479 = sadd.s32 %s477, %s478
        %s480 = smul.addr %s479, 16
        %s481 = scalar_lea.hbm %s1, %s480
        %s482 = smul.u32 %s467, 16
        %s483 = scalar_lea.vmem [#allocation3], %s482
        %s484 = smul.u32 %s467, 8
        %s485 = scalar_lea.sflag [#allocation4], %s484
        %s487 = sshll.u32 %s483, 4
        %s488 = int_to_ptr.vmem [resolvable:$true] %s487
        %490 = dma.hbm_to_vmem [thread:$0]  %s481, 32, %s488, %s485, 128, 128, 1
        %s491 = sadd.s32 %s468, %s48
        %s492 = smul.u32 %s491, 128
        %s493 = sadd.s32 %s492, %s473
        %s494 = sld [smem:[#allocation6 + %s493]]
        %s495 = sshrl.u32 %s494, 3
        %s496 = sand.u32 %s494, 7
        %s497 = smul.u32 %s495, 16
        %s498 = sadd.s32 %s496, %s497
        %s499 = smul.addr %s498, 16
        %s500 = scalar_lea.hbm %s1, %s499
        %s501 = sadd.s32 1, %s482
        %s502 = scalar_lea.vmem [#allocation3], %s501
        %s503 = sadd.s32 1, %s484
        %s504 = scalar_lea.sflag [#allocation4], %s503
        %s506 = sshll.u32 %s502, 4
        %s507 = int_to_ptr.vmem [resolvable:$true] %s506
        %509 = dma.hbm_to_vmem [thread:$0]  %s500, 32, %s507, %s504, 128, 128, 1
        %s510 = sadd.s32 %s468, %s64
        %s511 = smul.u32 %s510, 128
        %s512 = sadd.s32 %s511, %s473
        %s513 = sld [smem:[#allocation6 + %s512]]
        %s514 = sshrl.u32 %s513, 3
        %s515 = sand.u32 %s513, 7
        %s516 = smul.u32 %s514, 16
        %s517 = sadd.s32 %s515, %s516
        %s518 = smul.addr %s517, 16
        %s519 = scalar_lea.hbm %s1, %s518
        %s520 = sadd.s32 2, %s482
        %s521 = scalar_lea.vmem [#allocation3], %s520
        %s522 = sadd.s32 2, %s484
        %s523 = scalar_lea.sflag [#allocation4], %s522
        %s525 = sshll.u32 %s521, 4
        %s526 = int_to_ptr.vmem [resolvable:$true] %s525
        %528 = dma.hbm_to_vmem [thread:$0]  %s519, 32, %s526, %s523, 128, 128, 1
        %s529 = sadd.s32 %s468, %s80
        %s530 = smul.u32 %s529, 128
        %s531 = sadd.s32 %s530, %s473
        %s532 = sld [smem:[#allocation6 + %s531]]
        %s533 = sshrl.u32 %s532, 3
        %s534 = sand.u32 %s532, 7
        %s535 = smul.u32 %s533, 16
        %s536 = sadd.s32 %s534, %s535
        %s537 = smul.addr %s536, 16
        %s538 = scalar_lea.hbm %s1, %s537
        %s539 = sadd.s32 3, %s482
        %s540 = scalar_lea.vmem [#allocation3], %s539
        %s541 = sadd.s32 3, %s484
        %s542 = scalar_lea.sflag [#allocation4], %s541
        %s544 = sshll.u32 %s540, 4
        %s545 = int_to_ptr.vmem [resolvable:$true] %s544
        %547 = dma.hbm_to_vmem [thread:$0]  %s538, 32, %s545, %s542, 128, 128, 1
        %s548 = sadd.s32 %s468, %s96
        %s549 = smul.u32 %s548, 128
        %s550 = sadd.s32 %s549, %s473
        %s551 = sld [smem:[#allocation6 + %s550]]
        %s552 = sshrl.u32 %s551, 3
        %s553 = sand.u32 %s551, 7
        %s554 = smul.u32 %s552, 16
        %s555 = sadd.s32 %s553, %s554
        %s556 = smul.addr %s555, 16
        %s557 = scalar_lea.hbm %s1, %s556
        %s558 = sadd.s32 4, %s482
        %s559 = scalar_lea.vmem [#allocation3], %s558
        %s560 = sadd.s32 4, %s484
        %s561 = scalar_lea.sflag [#allocation4], %s560
        %s563 = sshll.u32 %s559, 4
        %s564 = int_to_ptr.vmem [resolvable:$true] %s563
        %566 = dma.hbm_to_vmem [thread:$0]  %s557, 32, %s564, %s561, 128, 128, 1
        %s567 = sadd.s32 %s468, %s112
        %s568 = smul.u32 %s567, 128
        %s569 = sadd.s32 %s568, %s473
        %s570 = sld [smem:[#allocation6 + %s569]]
        %s571 = sshrl.u32 %s570, 3
        %s572 = sand.u32 %s570, 7
        %s573 = smul.u32 %s571, 16
        %s574 = sadd.s32 %s572, %s573
        %s575 = smul.addr %s574, 16
        %s576 = scalar_lea.hbm %s1, %s575
        %s577 = sadd.s32 5, %s482
        %s578 = scalar_lea.vmem [#allocation3], %s577
        %s579 = sadd.s32 5, %s484
        %s580 = scalar_lea.sflag [#allocation4], %s579
        %s582 = sshll.u32 %s578, 4
        %s583 = int_to_ptr.vmem [resolvable:$true] %s582
        %585 = dma.hbm_to_vmem [thread:$0]  %s576, 32, %s583, %s580, 128, 128, 1
        %s586 = sadd.s32 %s468, %s128
        %s587 = smul.u32 %s586, 128
        %s588 = sadd.s32 %s587, %s473
        %s589 = sld [smem:[#allocation6 + %s588]]
        %s590 = sshrl.u32 %s589, 3
        %s591 = sand.u32 %s589, 7
        %s592 = smul.u32 %s590, 16
        %s593 = sadd.s32 %s591, %s592
        %s594 = smul.addr %s593, 16
        %s595 = scalar_lea.hbm %s1, %s594
        %s596 = sadd.s32 6, %s482
        %s597 = scalar_lea.vmem [#allocation3], %s596
        %s598 = sadd.s32 6, %s484
        %s599 = scalar_lea.sflag [#allocation4], %s598
        %s601 = sshll.u32 %s597, 4
        %s602 = int_to_ptr.vmem [resolvable:$true] %s601
        %604 = dma.hbm_to_vmem [thread:$0]  %s595, 32, %s602, %s599, 128, 128, 1
        %s605 = sadd.s32 %s468, %s144
        %s606 = smul.u32 %s605, 128
        %s607 = sadd.s32 %s606, %s473
        %s608 = sld [smem:[#allocation6 + %s607]]
        %s609 = sshrl.u32 %s608, 3
        %s610 = sand.u32 %s608, 7
        %s611 = smul.u32 %s609, 16
        %s612 = sadd.s32 %s610, %s611
        %s613 = smul.addr %s612, 16
        %s614 = scalar_lea.hbm %s1, %s613
        %s615 = sadd.s32 7, %s482
        %s616 = scalar_lea.vmem [#allocation3], %s615
        %s617 = sadd.s32 7, %s484
        %s618 = scalar_lea.sflag [#allocation4], %s617
        %s620 = sshll.u32 %s616, 4
        %s621 = int_to_ptr.vmem [resolvable:$true] %s620
        %623 = dma.hbm_to_vmem [thread:$0]  %s614, 32, %s621, %s618, 128, 128, 1
      $region24: #{tpu_custom_call.1} parent=17 // pred_fallthru
        _
      %v624 = vld [vmem:[#allocation2] sm:$0xff]
      %v625 = vld [vmem:[#allocation2 + $0x8] sm:$0xff]
      %s626 = smul.u32 %s417, 2
      %s627 = smul.addr %s626, 8
      %s628 = scalar_lea.vmem [#allocation3], %s627
      %v629 = vld [vmem:[%s628] sm:$0xff]
      %v630 = vld [vmem:[%s628 + $0x8] sm:$0xff]
      %v631 = vadd.f32 %v624, %v629
      %v632 = vadd.f32 %v625, %v630
      %633 = vst [vmem:[#allocation2] sm:$0xff] %v631
      %634 = vst [vmem:[#allocation2 + $0x8] sm:$0xff] %v632
    $region18: #{tpu_custom_call.1} parent=1 // loop_footer
      %s405 = sadd.s32 1, %s401
    $region19: #{tpu_custom_call.1} parent=1 // loop_footer_branch
      %400 = sbr.rel target = $region15
    $region20: #{tpu_custom_call.1} parent=1 // loop_exit
      _
    %v635 = vld [vmem:[#allocation2] sm:$0xff]
    %v636 = vld [vmem:[#allocation2 + $0x8] sm:$0xff]
    %v637 = vmul.f32 %v635, 0.125
    %v638 = vmul.f32 %v636, 0.125
    %v639 = vld [vmem:[#allocation7] sm:$0xff]
    %v640 = vld [vmem:[#allocation7 + $0x8] sm:$0xff]
    %v641 = vld [vmem:[#allocation7 + $0x10] sm:$0xff]
    %v642 = vld [vmem:[#allocation7 + $0x18] sm:$0xff]
    %v643 = vld [vmem:[#allocation7 + $0x20] sm:$0xff]
    %v644 = vld [vmem:[#allocation7 + $0x28] sm:$0xff]
    %v645 = vld [vmem:[#allocation7 + $0x30] sm:$0xff]
    %v646 = vld [vmem:[#allocation7 + $0x38] sm:$0xff]
    %v647 = vld [vmem:[#allocation7 + $0x40] sm:$0xff]
    %v648 = vld [vmem:[#allocation7 + $0x48] sm:$0xff]
    %v649 = vld [vmem:[#allocation7 + $0x50] sm:$0xff]
    %v650 = vld [vmem:[#allocation7 + $0x58] sm:$0xff]
    %v651 = vld [vmem:[#allocation7 + $0x60] sm:$0xff]
    %v652 = vld [vmem:[#allocation7 + $0x68] sm:$0xff]
    %v653 = vld [vmem:[#allocation7 + $0x70] sm:$0xff]
    %v654 = vld [vmem:[#allocation7 + $0x78] sm:$0xff]
    %v655 = vld [vmem:[#allocation7 + $0x80] sm:$0xff]
    %v656 = vld [vmem:[#allocation7 + $0x88] sm:$0xff]
    %v657 = vld [vmem:[#allocation7 + $0x90] sm:$0xff]
    %v658 = vld [vmem:[#allocation7 + $0x98] sm:$0xff]
    %v659 = vld [vmem:[#allocation7 + $0xa0] sm:$0xff]
    %v660 = vld [vmem:[#allocation7 + $0xa8] sm:$0xff]
    %v661 = vld [vmem:[#allocation7 + $0xb0] sm:$0xff]
    %v662 = vld [vmem:[#allocation7 + $0xb8] sm:$0xff]
    %v663 = vld [vmem:[#allocation7 + $0xc0] sm:$0xff]
    %v664 = vld [vmem:[#allocation7 + $0xc8] sm:$0xff]
    %v665 = vld [vmem:[#allocation7 + $0xd0] sm:$0xff]
    %v666 = vld [vmem:[#allocation7 + $0xd8] sm:$0xff]
    %v667 = vld [vmem:[#allocation7 + $0xe0] sm:$0xff]
    %v668 = vld [vmem:[#allocation7 + $0xe8] sm:$0xff]
    %v669 = vld [vmem:[#allocation7 + $0xf0] sm:$0xff]
    %v670 = vld [vmem:[#allocation7 + $0xf8] sm:$0xff]
    %v671 = vld [vmem:[%s3] sm:$0x1]
    %v673 = vlaneseq
    %v674 = vshrl.u32 %v673, 7
    %v675 = vsub.s32 0, %v674
    %v676 = vrot.slane %v671, %v675
    %678 = vmatprep.subr.mxu0 0.0
    %679 = vmatpush1.msra.mxu0 %v639
    %680 = vmatprep.subr.mxu0 0.0
    %681 = vmatpush1.msra.mxu0 %v640
    %682 = vmatprep.subr.mxu0 0.0
    %683 = vmatpush1.msra.mxu0 %v641
    %684 = vmatprep.subr.mxu0 0.0
    %685 = vmatpush1.msra.mxu0 %v642
    %686 = vmatprep.subr.mxu0 0.0
    %687 = vmatpush1.msra.mxu0 %v643
    %688 = vmatprep.subr.mxu0 0.0
    %689 = vmatpush1.msra.mxu0 %v644
    %690 = vmatprep.subr.mxu0 0.0
    %691 = vmatpush1.msra.mxu0 %v645
    %692 = vmatprep.subr.mxu0 0.0
    %693 = vmatpush1.msra.mxu0 %v646
    %694 = vmatprep.subr.mxu0 0.0
    %695 = vmatpush1.msra.mxu0 %v647
    %696 = vmatprep.subr.mxu0 0.0
    %697 = vmatpush1.msra.mxu0 %v648
    %698 = vmatprep.subr.mxu0 0.0
    %699 = vmatpush1.msra.mxu0 %v649
    %700 = vmatprep.subr.mxu0 0.0
    %701 = vmatpush1.msra.mxu0 %v650
    %702 = vmatprep.subr.mxu0 0.0
    %703 = vmatpush1.msra.mxu0 %v651
    %704 = vmatprep.subr.mxu0 0.0
    %705 = vmatpush1.msra.mxu0 %v652
    %706 = vmatprep.subr.mxu0 0.0
    %707 = vmatpush1.msra.mxu0 %v653
    %708 = vmatprep.subr.mxu0 0.0
    %709 = vmatpush1.msra.mxu0 %v654
    %710 = vmatprep.subr.mxu0 0.0
    %711 = vmatpush1.msra.mxu0 %v655
    %712 = vmatprep.subr.mxu0 0.0
    %713 = vmatpush1.msra.mxu0 %v656
    %714 = vmatprep.subr.mxu0 0.0
    %715 = vmatpush1.msra.mxu0 %v657
    %716 = vmatprep.subr.mxu0 0.0
    %717 = vmatpush1.msra.mxu0 %v658
    %718 = vmatprep.subr.mxu0 0.0
    %719 = vmatpush1.msra.mxu0 %v659
    %720 = vmatprep.subr.mxu0 0.0
    %721 = vmatpush1.msra.mxu0 %v660
    %722 = vmatprep.subr.mxu0 0.0
    %723 = vmatpush1.msra.mxu0 %v661
    %724 = vmatprep.subr.mxu0 0.0
    %725 = vmatpush1.msra.mxu0 %v662
    %726 = vmatprep.subr.mxu0 0.0
    %727 = vmatpush1.msra.mxu0 %v663
    %728 = vmatprep.subr.mxu0 0.0
    %729 = vmatpush1.msra.mxu0 %v664
    %730 = vmatprep.subr.mxu0 0.0
    %731 = vmatpush1.msra.mxu0 %v665
    %732 = vmatprep.subr.mxu0 0.0
    %733 = vmatpush1.msra.mxu0 %v666
    %734 = vmatprep.subr.mxu0 0.0
    %735 = vmatpush1.msra.mxu0 %v667
    %736 = vmatprep.subr.mxu0 0.0
    %737 = vmatpush1.msra.mxu0 %v668
    %738 = vmatprep.subr.mxu0 0.0
    %739 = vmatpush1.msra.mxu0 %v669
    %740 = vmatprep.subr.mxu0 0.0
    %741 = vmatpush1.msra.mxu0 %v670
    %742 = vmatprep.mubr.f32.mxu0 %v638
    %743 = vmatmul.mubr.f32.gmra.mrb[0].mxu0 %v637
    %v744 = vpop.f32.mrb[0].mxu0
    %v745 = vadd.f32 %v676, %v744
    %v746 = vpop.f32.mrb[0].mxu0
    %747 = vdwg.mxu0
    %748 = vst [vmem:[#allocation10] sm:$0xff] %v745
    // Predicated region
    $region25: #{tpu_custom_call.1} parent=1 // pred_check
      _
    $region26: #{tpu_custom_call.1} parent=1 // pred_check_branch
      %750 = sbr.rel (0) target = $region28
    $region27: #{tpu_custom_call.1} parent=1 // pred_region
      %s752 = ssub.s32 128, 128
      %753 = vsyncadd [#allocation9], %s752
      %s755 = sshll.u32 [#allocation10], 4
      %s756 = int_to_ptr.vmem [resolvable:$true] %s755
      %758 = dma.vmem_to_hbm [thread:$0]  %s756, 128, %s4, [#allocation9]
    $region28: #{tpu_custom_call.1} parent=1 // pred_fallthru
      _
    // Predicated region
    $region29: #{tpu_custom_call.1} parent=1 // pred_check
      _
    $region30: #{tpu_custom_call.1} parent=1 // pred_check_branch
      %760 = sbr.rel (0) target = $region32
    $region31: #{tpu_custom_call.1} parent=1 // pred_region
      %761 = dma.done [#allocation9], 128
    $region32: #{tpu_custom_call.1} parent=1 // pred_fallthru
      _
    %762 = vsyncpa [#allocation8], 1
    %763 = vsyncpa [#allocation9], 1
  %764 = vsyncmov [#allocation4]
  %s765 = vpop.sfrf %764
  %p766 = scmp.eq.s32.totalorder %s765, 0
  %p767 = pneg %p766
  %769 = shalt.err (%p767)
  %s770 = scalar_lea.sflag [#allocation4], 1
  %771 = vsyncmov %s770
  %s772 = vpop.sfrf %771
  %p773 = scmp.eq.s32.totalorder %s772, 0
  %p774 = pneg %p773
  %776 = shalt.err (%p774)
  %s777 = scalar_lea.sflag [#allocation4], 2
  %778 = vsyncmov %s777
  %s779 = vpop.sfrf %778
  %p780 = scmp.eq.s32.totalorder %s779, 0
  %p781 = pneg %p780
  %783 = shalt.err (%p781)
  %s784 = scalar_lea.sflag [#allocation4], 3
  %785 = vsyncmov %s784
  %s786 = vpop.sfrf %785
  %p787 = scmp.eq.s32.totalorder %s786, 0
  %p788 = pneg %p787
  %790 = shalt.err (%p788)
  %s791 = scalar_lea.sflag [#allocation4], 4
  %792 = vsyncmov %s791
  %s793 = vpop.sfrf %792
  %p794 = scmp.eq.s32.totalorder %s793, 0
  %p795 = pneg %p794
  %797 = shalt.err (%p795)
  %s798 = scalar_lea.sflag [#allocation4], 5
  %799 = vsyncmov %s798
  %s800 = vpop.sfrf %799
  %p801 = scmp.eq.s32.totalorder %s800, 0
  %p802 = pneg %p801
  %804 = shalt.err (%p802)
  %s805 = scalar_lea.sflag [#allocation4], 6
  %806 = vsyncmov %s805
  %s807 = vpop.sfrf %806
  %p808 = scmp.eq.s32.totalorder %s807, 0
  %p809 = pneg %p808
  %811 = shalt.err (%p809)
  %s812 = scalar_lea.sflag [#allocation4], 7
  %813 = vsyncmov %s812
  %s814 = vpop.sfrf %813
  %p815 = scmp.eq.s32.totalorder %s814, 0
  %p816 = pneg %p815
  %818 = shalt.err (%p816)
  %s819 = scalar_lea.sflag [#allocation4], 8
  %820 = vsyncmov %s819
  %s821 = vpop.sfrf %820
  %p822 = scmp.eq.s32.totalorder %s821, 0
  %p823 = pneg %p822
  %825 = shalt.err (%p823)
  %s826 = scalar_lea.sflag [#allocation4], 9
  %827 = vsyncmov %s826
  %s828 = vpop.sfrf %827
  %p829 = scmp.eq.s32.totalorder %s828, 0
  %p830 = pneg %p829
  %832 = shalt.err (%p830)
  %s833 = scalar_lea.sflag [#allocation4], 10
  %834 = vsyncmov %s833
  %s835 = vpop.sfrf %834
  %p836 = scmp.eq.s32.totalorder %s835, 0
  %p837 = pneg %p836
  %839 = shalt.err (%p837)
  %s840 = scalar_lea.sflag [#allocation4], 11
  %841 = vsyncmov %s840
  %s842 = vpop.sfrf %841
  %p843 = scmp.eq.s32.totalorder %s842, 0
  %p844 = pneg %p843
  %846 = shalt.err (%p844)
  %s847 = scalar_lea.sflag [#allocation4], 12
  %848 = vsyncmov %s847
  %s849 = vpop.sfrf %848
  %p850 = scmp.eq.s32.totalorder %s849, 0
  %p851 = pneg %p850
  %853 = shalt.err (%p851)
  %s854 = scalar_lea.sflag [#allocation4], 13
  %855 = vsyncmov %s854
  %s856 = vpop.sfrf %855
  %p857 = scmp.eq.s32.totalorder %s856, 0
  %p858 = pneg %p857
  %860 = shalt.err (%p858)
  %s861 = scalar_lea.sflag [#allocation4], 14
  %862 = vsyncmov %s861
  %s863 = vpop.sfrf %862
  %p864 = scmp.eq.s32.totalorder %s863, 0
  %p865 = pneg %p864
  %867 = shalt.err (%p865)
  %s868 = scalar_lea.sflag [#allocation4], 15
  %869 = vsyncmov %s868
  %s870 = vpop.sfrf %869
  %p871 = scmp.eq.s32.totalorder %s870, 0
  %p872 = pneg %p871
  %874 = shalt.err (%p872)
  %s875 = scalar_lea.sflag [#allocation4], 16
  %876 = vsyncmov %s875
  %s877 = vpop.sfrf %876
  %p878 = scmp.eq.s32.totalorder %s877, 0
  %p879 = pneg %p878
  %881 = shalt.err (%p879)
  %s882 = scalar_lea.sflag [#allocation4], 17
  %883 = vsyncmov %s882
  %s884 = vpop.sfrf %883
  %p885 = scmp.eq.s32.totalorder %s884, 0
  %p886 = pneg %p885
  %888 = shalt.err (%p886)
  %s889 = scalar_lea.sflag [#allocation4], 18
  %890 = vsyncmov %s889
  %s891 = vpop.sfrf %890
  %p892 = scmp.eq.s32.totalorder %s891, 0
  %p893 = pneg %p892
  %895 = shalt.err (%p893)
  %s896 = scalar_lea.sflag [#allocation4], 19
  %897 = vsyncmov %s896
  %s898 = vpop.sfrf %897
  %p899 = scmp.eq.s32.totalorder %s898, 0
  %p900 = pneg %p899
  %902 = shalt.err (%p900)
  %s903 = scalar_lea.sflag [#allocation4], 20
  %904 = vsyncmov %s903
  %s905 = vpop.sfrf %904
  %p906 = scmp.eq.s32.totalorder %s905, 0
  %p907 = pneg %p906
  %909 = shalt.err (%p907)
  %s910 = scalar_lea.sflag [#allocation4], 21
  %911 = vsyncmov %s910
  %s912 = vpop.sfrf %911
  %p913 = scmp.eq.s32.totalorder %s912, 0
  %p914 = pneg %p913
  %916 = shalt.err (%p914)
  %s917 = scalar_lea.sflag [#allocation4], 22
  %918 = vsyncmov %s917
  %s919 = vpop.sfrf %918
  %p920 = scmp.eq.s32.totalorder %s919, 0
  %p921 = pneg %p920
  %923 = shalt.err (%p921)
  %s924 = scalar_lea.sflag [#allocation4], 23
  %925 = vsyncmov %s924
  %s926 = vpop.sfrf %925
  %p927 = scmp.eq.s32.totalorder %s926, 0
  %p928 = pneg %p927
  %930 = shalt.err (%p928)
  %s931 = scalar_lea.sflag [#allocation4], 24
  %932 = vsyncmov %s931
  %s933 = vpop.sfrf %932
  %p934 = scmp.eq.s32.totalorder %s933, 0
  %p935 = pneg %p934
  %937 = shalt.err (%p935)
  %s938 = scalar_lea.sflag [#allocation4], 25
  %939 = vsyncmov %s938
  %s940 = vpop.sfrf %939
  %p941 = scmp.eq.s32.totalorder %s940, 0
  %p942 = pneg %p941
  %944 = shalt.err (%p942)
  %s945 = scalar_lea.sflag [#allocation4], 26
  %946 = vsyncmov %s945
  %s947 = vpop.sfrf %946
  %p948 = scmp.eq.s32.totalorder %s947, 0
  %p949 = pneg %p948
  %951 = shalt.err (%p949)
  %s952 = scalar_lea.sflag [#allocation4], 27
  %953 = vsyncmov %s952
  %s954 = vpop.sfrf %953
  %p955 = scmp.eq.s32.totalorder %s954, 0
  %p956 = pneg %p955
  %958 = shalt.err (%p956)
  %s959 = scalar_lea.sflag [#allocation4], 28
  %960 = vsyncmov %s959
  %s961 = vpop.sfrf %960
  %p962 = scmp.eq.s32.totalorder %s961, 0
  %p963 = pneg %p962
  %965 = shalt.err (%p963)
  %s966 = scalar_lea.sflag [#allocation4], 29
  %967 = vsyncmov %s966
  %s968 = vpop.sfrf %967
  %p969 = scmp.eq.s32.totalorder %s968, 0
  %p970 = pneg %p969
  %972 = shalt.err (%p970)
  %s973 = scalar_lea.sflag [#allocation4], 30
  %974 = vsyncmov %s973
  %s975 = vpop.sfrf %974
  %p976 = scmp.eq.s32.totalorder %s975, 0
  %p977 = pneg %p976
  %979 = shalt.err (%p977)
  %s980 = scalar_lea.sflag [#allocation4], 31
  %981 = vsyncmov %s980
  %s982 = vpop.sfrf %981
  %p983 = scmp.eq.s32.totalorder %s982, 0
  %p984 = pneg %p983
  %986 = shalt.err (%p984)

</llo_original>
